<compile_context>
chip_gen: v7x
topology: tpu7x:2x2x1
jax: 0.10.0
libtpu: 0.0.40
codegen_flags: <defaults>
</compile_context>

<pallas_src>
import functools

import jax
import jax.numpy as jnp
from jax.experimental import pallas as pl
from jax.experimental.pallas import tpu as pltpu

LN_EPS = 1e-5  # PyTorch nn.LayerNorm default eps


def _round_up(x, m):
    return ((x + m - 1) // m) * m


def decision_gate_kernel(
    x_ref,
    w1_ref, b1_ref, g1_ref, be1_ref, r1_ref,
    w2_ref, b2_ref, g2_ref, be2_ref, r2_ref,
    w3_ref, b3_ref,
    out_ref,                      # fused [tile, 4] = [logit0, logit1, prob0, prob1]
    *, approx_softmax: bool,
):
    # In-kernel cast (bf16 on the fast path): x stays f32 in HBM, no extra pass.
    x = x_ref[...].astype(w1_ref.dtype)

    # ---- Linear(input_dim -> hidden) + LayerNorm + ReLU ----
    # w1/b1 are pre-centered in the wrapper, so c1 == h1 - mean(h1) directly
    # (the LN row-mean is computed "for free" by the MXU).
    c1 = jnp.dot(x, w1_ref[...], preferred_element_type=jnp.float32) + b1_ref[...]
    v1 = jnp.dot(c1 * c1, r1_ref[...], preferred_element_type=jnp.float32)  # E[(h-mu)^2] via MXU
    h1 = jnp.maximum(c1 * (jax.lax.rsqrt(v1 + LN_EPS) * g1_ref[...]) + be1_ref[...], 0.0)
    # Dropout(p=0.1): eval-mode identity (inference semantics).
    # TODO(synk): training-mode Dropout (random masking) not implemented.

    # ---- Linear(hidden -> hidden//2) + LayerNorm + ReLU ----
    c2 = jnp.dot(h1.astype(w2_ref.dtype), w2_ref[...],
                 preferred_element_type=jnp.float32) + b2_ref[...]
    v2 = jnp.dot(c2 * c2, r2_ref[...], preferred_element_type=jnp.float32)
    h2 = jnp.maximum(c2 * (jax.lax.rsqrt(v2 + LN_EPS) * g2_ref[...]) + be2_ref[...], 0.0)

    # ---- Linear(hidden//2 -> 2) ----
    logits = jnp.dot(h2.astype(w3_ref.dtype), w3_ref[...],
                     preferred_element_type=jnp.float32) + b3_ref[...]

    # ---- closed-form 2-class softmax (no cross-lane max/sum reductions) ----
    d = logits[:, 1:2] - logits[:, 0:1]                       # l1 - l0
    p0 = pl.reciprocal(1.0 + jnp.exp(d), approx=approx_softmax)

    # lane-sparse fused output: static-slice stores, no concatenate lane shifts
    out_ref[:, 0:2] = logits.astype(out_ref.dtype)
    out_ref[:, 2:3] = p0.astype(out_ref.dtype)
    out_ref[:, 3:4] = (1.0 - p0).astype(out_ref.dtype)


def init_params(key, input_dim=152, hidden_dim=64):
    """Deterministic params mimicking PyTorch default Linear init (uniform ±1/sqrt(fan_in))."""
    h2 = hidden_dim // 2
    keys = jax.random.split(key, 6)

    def linear(kw, kb, fan_in, fan_out):
        bound = 1.0 / jnp.sqrt(jnp.float32(fan_in))
        w = jax.random.uniform(kw, (fan_in, fan_out), jnp.float32, -bound, bound)
        b = jax.random.uniform(kb, (1, fan_out), jnp.float32, -bound, bound)
        return w, b

    w1, b1 = linear(keys[0], keys[1], input_dim, hidden_dim)
    w2, b2 = linear(keys[2], keys[3], hidden_dim, h2)
    w3, b3 = linear(keys[4], keys[5], h2, 2)
    g1, be1 = jnp.ones((1, hidden_dim), jnp.float32), jnp.zeros((1, hidden_dim), jnp.float32)
    g2, be2 = jnp.ones((1, h2), jnp.float32), jnp.zeros((1, h2), jnp.float32)
    return dict(w1=w1, b1=b1, g1=g1, be1=be1,
                w2=w2, b2=b2, g2=g2, be2=be2,
                w3=w3, b3=b3)


def decision_gate(final_state, params, *, tile_b=2048, stream_bf16=True):
    """Forward pass.

    tile_b: batch rows per grid step.  Guidance: v5e keep <= ~2048-3072 (16 MiB
    scoped VMEM default is raised here explicitly, HBM is slowest); v6e up to
    ~4096-8192; v7x keep <= ~4096 (64 MiB physical VMEM per TensorCore).
    stream_bf16: run the three matmuls with bf16 inputs (x is cast *inside* the
    kernel) and f32 accumulation; LayerNorm / softmax math stays f32.
    """
    B, D = final_state.shape
    H1 = params["w1"].shape[1]
    H2 = params["w2"].shape[1]
    C = params["w3"].shape[1]
    assert C == 2, "closed-form softmax in the kernel assumes exactly 2 classes"

    x = final_state.astype(jnp.float32)   # streamed f32; bf16 cast happens in-kernel

    # Fold the LayerNorm mean-subtraction into the preceding Linear:
    #   (x@W + b) - mean_j(x@W + b) == x@(W - mean_j W) + (b - mean_j b)
    w1c = params["w1"] - jnp.mean(params["w1"], axis=1, keepdims=True)
    b1c = params["b1"] - jnp.mean(params["b1"], axis=1, keepdims=True)
    w2c = params["w2"] - jnp.mean(params["w2"], axis=1, keepdims=True)
    b2c = params["b2"] - jnp.mean(params["b2"], axis=1, keepdims=True)
    w3, b3 = params["w3"], params["b3"]
    r1 = jnp.full((H1, 1), 1.0 / H1, jnp.float32)   # MXU variance reducers (ones/H)
    r2 = jnp.full((H2, 1), 1.0 / H2, jnp.float32)

    if stream_bf16:
        w1c = w1c.astype(jnp.bfloat16)
        w2c = w2c.astype(jnp.bfloat16)
        w3 = w3.astype(jnp.bfloat16)

    # Batch tiling: 16-row multiples (bf16 sublane packing); cap so batches big
    # enough to split keep >= 2 grid steps (v7x has 2 TensorCores to shard onto).
    tile = _round_up(max(1, min(tile_b, B)), 16)
    if B >= 256 and B <= tile:
        tile = _round_up(pl.cdiv(B, 2), 16)
    grid = (pl.cdiv(B, tile),)   # ragged last block: OOB output rows are dropped

    const_args = (w1c, b1c, params["g1"], params["be1"], r1,
                  w2c, b2c, params["g2"], params["be2"], r2,
                  w3, b3)

    itemsize = lambda a: jnp.dtype(a.dtype).itemsize
    cost = pl.CostEstimate(
        flops=2 * B * (D * H1 + H1 * H2 + H2 * C + H1 + H2),
        transcendentals=3 * B,                       # 2x rsqrt + 1x exp per row
        bytes_accessed=(x.size * itemsize(x)
                        + sum(a.size * itemsize(a) for a in const_args)
                        + B * 2 * C * 4),
    )

    x_spec = pl.BlockSpec((tile, D), lambda i: (i, 0))
    const_spec = lambda a: pl.BlockSpec(a.shape, lambda i: (0, 0))  # VMEM-resident across grid

    # Scoped VMEM budget: double-buffered x + out blocks + f32 temps; generous
    # but capped at 64 MiB (safe on every generation incl. v7x physical VMEM).
    vmem_limit = int(min(max(tile * 8 * 1024 + (4 << 20), 32 << 20), 64 << 20))

    fused = pl.pallas_call(
        functools.partial(decision_gate_kernel, approx_softmax=stream_bf16),
        grid=grid,
        out_shape=jax.ShapeDtypeStruct((B, 2 * C), jnp.float32),
        in_specs=[x_spec] + [const_spec(a) for a in const_args],
        out_specs=pl.BlockSpec((tile, 2 * C), lambda i: (i, 0)),
        compiler_params=pltpu.CompilerParams(
            dimension_semantics=("parallel",),
            vmem_limit_bytes=vmem_limit,
        ),
        cost_estimate=cost,
    )(x, *const_args)

    logits = fused[:, :C]
    probs = fused[:, C:]
    return {
        "decision_logits": logits,
        "decision_probs": probs,
        "execute_probability": probs[:, 0],
    }


def decision_gate_ref(x, p):
    """Pure-JAX reference (two-pass LayerNorm, standard softmax) for verification."""
    def ln(h, gamma, beta):
        mu = jnp.mean(h, axis=-1, keepdims=True)
        var = jnp.mean((h - mu) ** 2, axis=-1, keepdims=True)
        return (h - mu) * jax.lax.rsqrt(var + LN_EPS) * gamma + beta

    h1 = jnp.maximum(ln(x @ p["w1"] + p["b1"], p["g1"], p["be1"]), 0.0)
    h2 = jnp.maximum(ln(h1 @ p["w2"] + p["b2"], p["g2"], p["be2"]), 0.0)
    logits = h2 @ p["w3"] + p["b3"]
    probs = jax.nn.softmax(logits, axis=-1)
    return logits, probs, probs[:, 0]


if __name__ == "__main__":
    INPUT_DIM, HIDDEN_DIM = 152, 64

    key = jax.random.PRNGKey(0)
    k_params, k_x = jax.random.split(key)
    params = init_params(k_params, INPUT_DIM, HIDDEN_DIM)

    # --- check 1: f32 path, ragged batch across 2 grid steps (B=20, tile=16, no pad) ---
    x = jax.random.normal(k_x, (20, INPUT_DIM), jnp.float32)
    out = decision_gate(x, params, tile_b=16, stream_bf16=False)
    jax.block_until_ready(out)
    ref_logits, ref_probs, ref_exec = decision_gate_ref(x, params)
    assert out["decision_logits"].shape == (20, 2)
    assert out["decision_probs"].shape == (20, 2)
    assert out["execute_probability"].shape == (20,)
    # 2e-3 atol: LN mean/variance are routed through the MXU (exact in real
    # arithmetic; small TPU default-matmul-precision differences vs jnp.mean).
    assert jnp.allclose(out["decision_logits"], ref_logits, atol=2e-3), "logits mismatch (f32)"
    assert jnp.allclose(out["decision_probs"], ref_probs, atol=2e-3), "probs mismatch (f32)"
    assert jnp.allclose(out["execute_probability"], ref_exec, atol=2e-3), "exec mismatch (f32)"
    assert jnp.allclose(jnp.sum(out["decision_probs"], axis=-1), 1.0, atol=1e-5), "probs not normalized"

    # --- check 2: default fast path (in-kernel bf16 cast, approx reciprocal), small batch ---
    # NOTE: at tiny B this kernel is launch/DMA overhead-bound; the grid/bf16
    # levers pay off when B is in the thousands.
    x2 = jax.random.normal(jax.random.PRNGKey(2), (4, INPUT_DIM), jnp.float32)
    out2 = decision_gate(x2, params)  # tile_b=2048, stream_bf16=True
    jax.block_until_ready(out2)
    _, ref_probs2, _ = decision_gate_ref(x2, params)
    assert out2["decision_probs"].shape == (4, 2)
    assert out2["execute_probability"].shape == (4,)
    assert jnp.allclose(out2["decision_probs"], ref_probs2, atol=5e-2), "probs mismatch (bf16)"
    assert jnp.allclose(jnp.sum(out2["decision_probs"], axis=-1), 1.0, atol=1e-3), "probs not normalized"

    print("KERNEL_OK")
</pallas_src>

<mosaic_0001>
module attributes {stable_mosaic.version = 11 : i64} {
  func.func @decision_gate_kernel(%arg0: i32, %arg1: memref<16x152xf32, #tpu.memory_space<vmem>>, %arg2: memref<152x64xf32, #tpu.memory_space<vmem>>, %arg3: memref<1x64xf32, #tpu.memory_space<vmem>>, %arg4: memref<1x64xf32, #tpu.memory_space<vmem>>, %arg5: memref<1x64xf32, #tpu.memory_space<vmem>>, %arg6: memref<64x1xf32, #tpu.memory_space<vmem>>, %arg7: memref<64x32xf32, #tpu.memory_space<vmem>>, %arg8: memref<1x32xf32, #tpu.memory_space<vmem>>, %arg9: memref<1x32xf32, #tpu.memory_space<vmem>>, %arg10: memref<1x32xf32, #tpu.memory_space<vmem>>, %arg11: memref<32x1xf32, #tpu.memory_space<vmem>>, %arg12: memref<32x2xf32, #tpu.memory_space<vmem>>, %arg13: memref<1x2xf32, #tpu.memory_space<vmem>>, %arg14: memref<16x4xf32, #tpu.memory_space<vmem>>) attributes {dimension_semantics = [#tpu.dimension_semantics<parallel>], iteration_bounds = array<i64: 2>, scalar_prefetch = 0 : i64, scratch_operands = 0 : i64, tpu.core_type = #tpu.core_type<tc>, window_params = [{transform_indices = @transform_0, window_bounds = array<i64: 16, 152>}, {pipeline_mode = #tpu.pipeline_mode<synchronous>, transform_indices = @transform_1, window_bounds = array<i64: 152, 64>}, {pipeline_mode = #tpu.pipeline_mode<synchronous>, transform_indices = @transform_2, window_bounds = array<i64: 1, 64>}, {pipeline_mode = #tpu.pipeline_mode<synchronous>, transform_indices = @transform_3, window_bounds = array<i64: 1, 64>}, {pipeline_mode = #tpu.pipeline_mode<synchronous>, transform_indices = @transform_4, window_bounds = array<i64: 1, 64>}, {pipeline_mode = #tpu.pipeline_mode<synchronous>, transform_indices = @transform_5, window_bounds = array<i64: 64, 1>}, {pipeline_mode = #tpu.pipeline_mode<synchronous>, transform_indices = @transform_6, window_bounds = array<i64: 64, 32>}, {pipeline_mode = #tpu.pipeline_mode<synchronous>, transform_indices = @transform_7, window_bounds = array<i64: 1, 32>}, {pipeline_mode = #tpu.pipeline_mode<synchronous>, transform_indices = @transform_8, window_bounds = array<i64: 1, 32>}, {pipeline_mode = #tpu.pipeline_mode<synchronous>, transform_indices = @transform_9, window_bounds = array<i64: 1, 32>}, {pipeline_mode = #tpu.pipeline_mode<synchronous>, transform_indices = @transform_10, window_bounds = array<i64: 32, 1>}, {pipeline_mode = #tpu.pipeline_mode<synchronous>, transform_indices = @transform_11, window_bounds = array<i64: 32, 2>}, {pipeline_mode = #tpu.pipeline_mode<synchronous>, transform_indices = @transform_12, window_bounds = array<i64: 1, 2>}, {transform_indices = @transform_13, window_bounds = array<i64: 16, 4>}]} {
    %c0 = arith.constant 0 : index
    %c0_0 = arith.constant 0 : index
    %0 = vector.load %arg1[%c0, %c0_0] : memref<16x152xf32, #tpu.memory_space<vmem>>, vector<16x152xf32>
    %c0_1 = arith.constant 0 : index
    %c0_2 = arith.constant 0 : index
    %1 = vector.load %arg2[%c0_1, %c0_2] : memref<152x64xf32, #tpu.memory_space<vmem>>, vector<152x64xf32>
    %cst = arith.constant dense<0.000000e+00> : vector<16x64xf32>
    %2 = tpu.matmul %0, %1, %cst {dimension_numbers = #tpu.dot_dimension_numbers<[1], [0], [0], [1], [0, 0, 1, 1], [], []>} : vector<16x152xf32>, vector<152x64xf32>, vector<16x64xf32> -> vector<16x64xf32>
    %c0_3 = arith.constant 0 : index
    %c0_4 = arith.constant 0 : index
    %3 = vector.load %arg3[%c0_3, %c0_4] : memref<1x64xf32, #tpu.memory_space<vmem>>, vector<1x64xf32>
    %4 = vector.broadcast %3 : vector<1x64xf32> to vector<16x64xf32>
    %5 = arith.addf %2, %4 : vector<16x64xf32>
    %6 = arith.mulf %5, %5 : vector<16x64xf32>
    %c0_5 = arith.constant 0 : index
    %c0_6 = arith.constant 0 : index
    %7 = vector.load %arg6[%c0_5, %c0_6] : memref<64x1xf32, #tpu.memory_space<vmem>>, vector<64x1xf32>
    %cst_7 = arith.constant dense<0.000000e+00> : vector<16x1xf32>
    %8 = tpu.matmul %6, %7, %cst_7 {dimension_numbers = #tpu.dot_dimension_numbers<[1], [0], [0], [1], [0, 0, 1, 1], [], []>} : vector<16x64xf32>, vector<64x1xf32>, vector<16x1xf32> -> vector<16x1xf32>
    %cst_8 = arith.constant 9.99999974E-6 : f32
    %9 = vector.broadcast %cst_8 : f32 to vector<16x1xf32>
    %10 = arith.addf %8, %9 : vector<16x1xf32>
    %11 = math.rsqrt %10 : vector<16x1xf32>
    %c0_9 = arith.constant 0 : index
    %c0_10 = arith.constant 0 : index
    %12 = vector.load %arg4[%c0_9, %c0_10] : memref<1x64xf32, #tpu.memory_space<vmem>>, vector<1x64xf32>
    %13 = vector.broadcast %11 : vector<16x1xf32> to vector<16x64xf32>
    %14 = vector.broadcast %12 : vector<1x64xf32> to vector<16x64xf32>
    %15 = arith.mulf %13, %14 : vector<16x64xf32>
    %16 = arith.mulf %5, %15 : vector<16x64xf32>
    %c0_11 = arith.constant 0 : index
    %c0_12 = arith.constant 0 : index
    %17 = vector.load %arg5[%c0_11, %c0_12] : memref<1x64xf32, #tpu.memory_space<vmem>>, vector<1x64xf32>
    %18 = vector.broadcast %17 : vector<1x64xf32> to vector<16x64xf32>
    %19 = arith.addf %16, %18 : vector<16x64xf32>
    %cst_13 = arith.constant 0.000000e+00 : f32
    %20 = vector.broadcast %cst_13 : f32 to vector<16x64xf32>
    %21 = arith.maximumf %19, %20 : vector<16x64xf32>
    %c0_14 = arith.constant 0 : index
    %c0_15 = arith.constant 0 : index
    %22 = vector.load %arg7[%c0_14, %c0_15] : memref<64x32xf32, #tpu.memory_space<vmem>>, vector<64x32xf32>
    %cst_16 = arith.constant dense<0.000000e+00> : vector<16x32xf32>
    %23 = tpu.matmul %21, %22, %cst_16 {dimension_numbers = #tpu.dot_dimension_numbers<[1], [0], [0], [1], [0, 0, 1, 1], [], []>} : vector<16x64xf32>, vector<64x32xf32>, vector<16x32xf32> -> vector<16x32xf32>
    %c0_17 = arith.constant 0 : index
    %c0_18 = arith.constant 0 : index
    %24 = vector.load %arg8[%c0_17, %c0_18] : memref<1x32xf32, #tpu.memory_space<vmem>>, vector<1x32xf32>
    %25 = vector.broadcast %24 : vector<1x32xf32> to vector<16x32xf32>
    %26 = arith.addf %23, %25 : vector<16x32xf32>
    %27 = arith.mulf %26, %26 : vector<16x32xf32>
    %c0_19 = arith.constant 0 : index
    %c0_20 = arith.constant 0 : index
    %28 = vector.load %arg11[%c0_19, %c0_20] : memref<32x1xf32, #tpu.memory_space<vmem>>, vector<32x1xf32>
    %cst_21 = arith.constant dense<0.000000e+00> : vector<16x1xf32>
    %29 = tpu.matmul %27, %28, %cst_21 {dimension_numbers = #tpu.dot_dimension_numbers<[1], [0], [0], [1], [0, 0, 1, 1], [], []>} : vector<16x32xf32>, vector<32x1xf32>, vector<16x1xf32> -> vector<16x1xf32>
    %cst_22 = arith.constant 9.99999974E-6 : f32
    %30 = vector.broadcast %cst_22 : f32 to vector<16x1xf32>
    %31 = arith.addf %29, %30 : vector<16x1xf32>
    %32 = math.rsqrt %31 : vector<16x1xf32>
    %c0_23 = arith.constant 0 : index
    %c0_24 = arith.constant 0 : index
    %33 = vector.load %arg9[%c0_23, %c0_24] : memref<1x32xf32, #tpu.memory_space<vmem>>, vector<1x32xf32>
    %34 = vector.broadcast %32 : vector<16x1xf32> to vector<16x32xf32>
    %35 = vector.broadcast %33 : vector<1x32xf32> to vector<16x32xf32>
    %36 = arith.mulf %34, %35 : vector<16x32xf32>
    %37 = arith.mulf %26, %36 : vector<16x32xf32>
    %c0_25 = arith.constant 0 : index
    %c0_26 = arith.constant 0 : index
    %38 = vector.load %arg10[%c0_25, %c0_26] : memref<1x32xf32, #tpu.memory_space<vmem>>, vector<1x32xf32>
    %39 = vector.broadcast %38 : vector<1x32xf32> to vector<16x32xf32>
    %40 = arith.addf %37, %39 : vector<16x32xf32>
    %cst_27 = arith.constant 0.000000e+00 : f32
    %41 = vector.broadcast %cst_27 : f32 to vector<16x32xf32>
    %42 = arith.maximumf %40, %41 : vector<16x32xf32>
    %c0_28 = arith.constant 0 : index
    %c0_29 = arith.constant 0 : index
    %43 = vector.load %arg12[%c0_28, %c0_29] : memref<32x2xf32, #tpu.memory_space<vmem>>, vector<32x2xf32>
    %cst_30 = arith.constant dense<0.000000e+00> : vector<16x2xf32>
    %44 = tpu.matmul %42, %43, %cst_30 {dimension_numbers = #tpu.dot_dimension_numbers<[1], [0], [0], [1], [0, 0, 1, 1], [], []>} : vector<16x32xf32>, vector<32x2xf32>, vector<16x2xf32> -> vector<16x2xf32>
    %c0_31 = arith.constant 0 : index
    %c0_32 = arith.constant 0 : index
    %45 = vector.load %arg13[%c0_31, %c0_32] : memref<1x2xf32, #tpu.memory_space<vmem>>, vector<1x2xf32>
    %46 = vector.broadcast %45 : vector<1x2xf32> to vector<16x2xf32>
    %47 = arith.addf %44, %46 : vector<16x2xf32>
    %48 = vector.extract_strided_slice %47 {offsets = [0, 1], sizes = [16, 1], strides = [1, 1]} : vector<16x2xf32> to vector<16x1xf32>
    %49 = vector.extract_strided_slice %47 {offsets = [0, 0], sizes = [16, 1], strides = [1, 1]} : vector<16x2xf32> to vector<16x1xf32>
    %50 = arith.subf %48, %49 : vector<16x1xf32>
    %51 = math.exp %50 : vector<16x1xf32>
    %cst_33 = arith.constant 1.000000e+00 : f32
    %52 = vector.broadcast %cst_33 : f32 to vector<16x1xf32>
    %53 = arith.addf %52, %51 : vector<16x1xf32>
    %54 = tpu.reciprocal %53 : vector<16x1xf32> -> vector<16x1xf32>
    %c0_34 = arith.constant 0 : index
    %c0_35 = arith.constant 0 : index
    %55 = vector.load %arg14[%c0_34, %c0_35] : memref<16x4xf32, #tpu.memory_space<vmem>>, vector<16x2xf32>
    tpu.vector_store %arg14[%c0_34, %c0_35], %47 {strides = array<i32>} : memref<16x4xf32, #tpu.memory_space<vmem>>, vector<16x2xf32>,
    %c0_36 = arith.constant 0 : index
    %c2 = arith.constant 2 : index
    %56 = vector.load %arg14[%c0_36, %c2] : memref<16x4xf32, #tpu.memory_space<vmem>>, vector<16x1xf32>
    tpu.vector_store %arg14[%c0_36, %c2], %54 {strides = array<i32>} : memref<16x4xf32, #tpu.memory_space<vmem>>, vector<16x1xf32>,
    %cst_37 = arith.constant 1.000000e+00 : f32
    %57 = vector.broadcast %cst_37 : f32 to vector<16x1xf32>
    %58 = arith.subf %57, %54 : vector<16x1xf32>
    %c0_38 = arith.constant 0 : index
    %c3 = arith.constant 3 : index
    %59 = vector.load %arg14[%c0_38, %c3] : memref<16x4xf32, #tpu.memory_space<vmem>>, vector<16x1xf32>
    tpu.vector_store %arg14[%c0_38, %c3], %58 {strides = array<i32>} : memref<16x4xf32, #tpu.memory_space<vmem>>, vector<16x1xf32>,
    return
  }
  func.func @transform_0(%arg0: i32) -> (i32, i32) {
    %c0_i32 = arith.constant 0 : i32
    %c0_i32_0 = arith.constant 0 : i32
    return %arg0, %c0_i32 : i32, i32
  }
  func.func @transform_1(%arg0: i32) -> (i32, i32) {
    %c0_i32 = arith.constant 0 : i32
    %c0_i32_0 = arith.constant 0 : i32
    %c0_i32_1 = arith.constant 0 : i32
    return %c0_i32, %c0_i32_0 : i32, i32
  }
  func.func @transform_2(%arg0: i32) -> (i32, i32) {
    %c0_i32 = arith.constant 0 : i32
    %c0_i32_0 = arith.constant 0 : i32
    %c0_i32_1 = arith.constant 0 : i32
    return %c0_i32, %c0_i32_0 : i32, i32
  }
  func.func @transform_3(%arg0: i32) -> (i32, i32) {
    %c0_i32 = arith.constant 0 : i32
    %c0_i32_0 = arith.constant 0 : i32
    %c0_i32_1 = arith.constant 0 : i32
    return %c0_i32, %c0_i32_0 : i32, i32
  }
  func.func @transform_4(%arg0: i32) -> (i32, i32) {
    %c0_i32 = arith.constant 0 : i32
    %c0_i32_0 = arith.constant 0 : i32
    %c0_i32_1 = arith.constant 0 : i32
    return %c0_i32, %c0_i32_0 : i32, i32
  }
  func.func @transform_5(%arg0: i32) -> (i32, i32) {
    %c0_i32 = arith.constant 0 : i32
    %c0_i32_0 = arith.constant 0 : i32
    %c0_i32_1 = arith.constant 0 : i32
    return %c0_i32, %c0_i32_0 : i32, i32
  }
  func.func @transform_6(%arg0: i32) -> (i32, i32) {
    %c0_i32 = arith.constant 0 : i32
    %c0_i32_0 = arith.constant 0 : i32
    %c0_i32_1 = arith.constant 0 : i32
    return %c0_i32, %c0_i32_0 : i32, i32
  }
  func.func @transform_7(%arg0: i32) -> (i32, i32) {
    %c0_i32 = arith.constant 0 : i32
    %c0_i32_0 = arith.constant 0 : i32
    %c0_i32_1 = arith.constant 0 : i32
    return %c0_i32, %c0_i32_0 : i32, i32
  }
  func.func @transform_8(%arg0: i32) -> (i32, i32) {
    %c0_i32 = arith.constant 0 : i32
    %c0_i32_0 = arith.constant 0 : i32
    %c0_i32_1 = arith.constant 0 : i32
    return %c0_i32, %c0_i32_0 : i32, i32
  }
  func.func @transform_9(%arg0: i32) -> (i32, i32) {
    %c0_i32 = arith.constant 0 : i32
    %c0_i32_0 = arith.constant 0 : i32
    %c0_i32_1 = arith.constant 0 : i32
    return %c0_i32, %c0_i32_0 : i32, i32
  }
  func.func @transform_10(%arg0: i32) -> (i32, i32) {
    %c0_i32 = arith.constant 0 : i32
    %c0_i32_0 = arith.constant 0 : i32
    %c0_i32_1 = arith.constant 0 : i32
    return %c0_i32, %c0_i32_0 : i32, i32
  }
  func.func @transform_11(%arg0: i32) -> (i32, i32) {
    %c0_i32 = arith.constant 0 : i32
    %c0_i32_0 = arith.constant 0 : i32
    %c0_i32_1 = arith.constant 0 : i32
    return %c0_i32, %c0_i32_0 : i32, i32
  }
  func.func @transform_12(%arg0: i32) -> (i32, i32) {
    %c0_i32 = arith.constant 0 : i32
    %c0_i32_0 = arith.constant 0 : i32
    %c0_i32_1 = arith.constant 0 : i32
    return %c0_i32, %c0_i32_0 : i32, i32
  }
  func.func @transform_13(%arg0: i32) -> (i32, i32) {
    %c0_i32 = arith.constant 0 : i32
    %c0_i32_0 = arith.constant 0 : i32
    return %arg0, %c0_i32 : i32, i32
  }
}

</mosaic_0001>

<llo_original>
// kernel: tpu_custom_call.1
$region0: #{tpu_custom_call.1}
  #allocation0 [shape = 'u32[]', space=smem, size = 0x4, offset = 0x4, fixed_abs, tag = 'smem constant byte address 0x4 - core index']
  #allocation1 [shape = 'u32[144,128]{1,0:T(1,128)}', space=vmem, size = 0x12000, scoped, tag = 'internal scratch']
  %s0 = inlined_call_operand.vmem [shape: f32[20,152], index: 0, kind: input, shape index: {}]
  %s1 = inlined_call_operand.vmem [shape: f32[152,64], index: 1, kind: input, shape index: {}]
  %s2 = inlined_call_operand.vmem [shape: f32[1,64], index: 2, kind: input, shape index: {}]
  %s3 = inlined_call_operand.vmem [shape: f32[1,64], index: 3, kind: input, shape index: {}]
  %s4 = inlined_call_operand.vmem [shape: f32[1,64], index: 4, kind: input, shape index: {}]
  %s5 = inlined_call_operand.vmem [shape: f32[64,1], index: 5, kind: input, shape index: {}]
  %s6 = inlined_call_operand.vmem [shape: f32[64,32], index: 6, kind: input, shape index: {}]
  %s7 = inlined_call_operand.vmem [shape: f32[1,32], index: 7, kind: input, shape index: {}]
  %s8 = inlined_call_operand.vmem [shape: f32[1,32], index: 8, kind: input, shape index: {}]
  %s9 = inlined_call_operand.vmem [shape: f32[1,32], index: 9, kind: input, shape index: {}]
  %s10 = inlined_call_operand.vmem [shape: f32[32,1], index: 10, kind: input, shape index: {}]
  %s11 = inlined_call_operand.vmem [shape: f32[32,2], index: 11, kind: input, shape index: {}]
  %s12 = inlined_call_operand.vmem [shape: f32[1,2], index: 12, kind: input, shape index: {}]
  %s13 = inlined_call_operand.vmem [shape: f32[20,4], index: 13, kind: output, shape index: {}]
  %s14 = sld [smem:[#allocation0]]
  $region133: #{tpu_custom_call.1} parent=0
    _
  %s16 = ssub.s32 1, %s14
  %s17 = scalar_select 0, %s16, %s14
  $region1: #{tpu_custom_call.1} parent=0
    #allocation2 [shape = 'u8[16384]{0}', space=vmem, size = 0x4000, scoped, tag = 'output window, operand 0']
    loop: start=0, step=1, limit=4
    $region2: #{tpu_custom_call.1} parent=1 // loop_pre_header
      _
    $region3: #{tpu_custom_call.1} parent=1 // loop_header
      %s19 = sphi 0, %s23
      %p20 = scmp.ge.s32.totalorder %s19, 4
      %s29 = sphi 0, %s31
      %s32 = sphi 0, %s29
      %s33 = sphi 0, %s32
      %s49 = sphi 0, %s33
      %s53 = sphi 0, %s53
      %s55 = sphi 0, %s53
      %s56 = sphi 0, %s55
      %s70 = sphi 0, %s56
      %s74 = sphi 0, %s74
      %s76 = sphi 0, %s74
      %s77 = sphi 0, %s76
      %s91 = sphi 0, %s77
      %s95 = sphi 0, %s95
      %s97 = sphi 0, %s95
      %s98 = sphi 0, %s97
      %s112 = sphi 0, %s98
      %s116 = sphi 0, %s116
      %s118 = sphi 0, %s116
      %s119 = sphi 0, %s118
      %s133 = sphi 0, %s119
      %s137 = sphi 0, %s137
      %s139 = sphi 0, %s137
      %s140 = sphi 0, %s139
      %s154 = sphi 0, %s140
      %s158 = sphi 0, %s158
      %s160 = sphi 0, %s158
      %s161 = sphi 0, %s160
      %s175 = sphi 0, %s161
      %s179 = sphi 0, %s179
      %s181 = sphi 0, %s179
      %s182 = sphi 0, %s181
      %s196 = sphi 0, %s182
      %s200 = sphi 0, %s200
      %s202 = sphi 0, %s200
      %s203 = sphi 0, %s202
      %s217 = sphi 0, %s203
      %s221 = sphi 0, %s221
      %s223 = sphi 0, %s221
      %s224 = sphi 0, %s223
      %s238 = sphi 0, %s224
      %s242 = sphi 0, %s242
      %s244 = sphi 0, %s242
      %s245 = sphi 0, %s244
      %s259 = sphi 0, %s245
      %s263 = sphi 0, %s263
      %s265 = sphi 0, %s263
      %s266 = sphi 0, %s265
      %s280 = sphi 0, %s266
      %s284 = sphi 0, %s284
      %s286 = sphi 0, %s284
      %s287 = sphi 0, %s286
      %s301 = sphi 0, %s287
      %s307 = sphi 0, %s309
      %s310 = sphi 0, %s307
      %s311 = sphi 0, %s310
      %s327 = sphi 0, %s311
    $region4: #{tpu_custom_call.1} parent=1 // loop_header_branch
      %22 = sbr.rel (%p20) target = $region8
    $region5: #{tpu_custom_call.1} parent=1 // loop_body
      %s24 = ssub.s32 %s19, 1
      %s25 = ssub.s32 %s19, 2
      %s26 = sadd.s32 %s19, 1
      %s27 = ssub.s32 %s19, %s26
      %p28 = scmp.eq.s32.totalorder %s27, 0
      %s30 = sadd.s32 %s29, 1
      %s31 = scalar_select %p28, %s29, %s30
      %p34 = pneg %p28
      %p35 = scmp.eq.s32.totalorder %s19, 1
      %p36 = por %p34, %p35
      %p37 = scmp.ne.s32.totalorder %s29, %s32
      %p38 = scmp.eq.s32.totalorder %s19, 0
      %p39 = por %p37, %p38
      %p40 = scmp.ne.s32.totalorder %s29, %s32
      %p41 = scmp.eq.s32.totalorder %s24, 1
      %p42 = por %p40, %p41
      %p43 = scmp.ne.s32.totalorder %s32, %s33
      %p44 = scmp.eq.s32.totalorder %s24, 0
      %p45 = por %p43, %p44
      %p46 = scmp.ne.s32.totalorder %s32, %s33
      %p47 = scmp.eq.s32.totalorder %s25, 1
      %p48 = por %p46, %p47
      %p50 = scmp.ne.s32.totalorder %s33, %s49
      %p51 = scmp.eq.s32.totalorder %s25, 0
      %p52 = por %p50, %p51
      %s54 = sadd.s32 %s53, 1
      %p57 = scmp.eq.s32.totalorder %s19, 1
      %p58 = scmp.ne.s32.totalorder %s53, %s55
      %p59 = scmp.eq.s32.totalorder %s19, 0
      %p60 = por %p58, %p59
      %p61 = scmp.ne.s32.totalorder %s53, %s55
      %p62 = scmp.eq.s32.totalorder %s24, 1
      %p63 = por %p61, %p62
      %p64 = scmp.ne.s32.totalorder %s55, %s56
      %p65 = scmp.eq.s32.totalorder %s24, 0
      %p66 = por %p64, %p65
      %p67 = scmp.ne.s32.totalorder %s55, %s56
      %p68 = scmp.eq.s32.totalorder %s25, 1
      %p69 = por %p67, %p68
      %p71 = scmp.ne.s32.totalorder %s56, %s70
      %p72 = scmp.eq.s32.totalorder %s25, 0
      %p73 = por %p71, %p72
      %s75 = sadd.s32 %s74, 1
      %p78 = scmp.eq.s32.totalorder %s19, 1
      %p79 = scmp.ne.s32.totalorder %s74, %s76
      %p80 = scmp.eq.s32.totalorder %s19, 0
      %p81 = por %p79, %p80
      %p82 = scmp.ne.s32.totalorder %s74, %s76
      %p83 = scmp.eq.s32.totalorder %s24, 1
      %p84 = por %p82, %p83
      %p85 = scmp.ne.s32.totalorder %s76, %s77
      %p86 = scmp.eq.s32.totalorder %s24, 0
      %p87 = por %p85, %p86
      %p88 = scmp.ne.s32.totalorder %s76, %s77
      %p89 = scmp.eq.s32.totalorder %s25, 1
      %p90 = por %p88, %p89
      %p92 = scmp.ne.s32.totalorder %s77, %s91
      %p93 = scmp.eq.s32.totalorder %s25, 0
      %p94 = por %p92, %p93
      %s96 = sadd.s32 %s95, 1
      %p99 = scmp.eq.s32.totalorder %s19, 1
      %p100 = scmp.ne.s32.totalorder %s95, %s97
      %p101 = scmp.eq.s32.totalorder %s19, 0
      %p102 = por %p100, %p101
      %p103 = scmp.ne.s32.totalorder %s95, %s97
      %p104 = scmp.eq.s32.totalorder %s24, 1
      %p105 = por %p103, %p104
      %p106 = scmp.ne.s32.totalorder %s97, %s98
      %p107 = scmp.eq.s32.totalorder %s24, 0
      %p108 = por %p106, %p107
      %p109 = scmp.ne.s32.totalorder %s97, %s98
      %p110 = scmp.eq.s32.totalorder %s25, 1
      %p111 = por %p109, %p110
      %p113 = scmp.ne.s32.totalorder %s98, %s112
      %p114 = scmp.eq.s32.totalorder %s25, 0
      %p115 = por %p113, %p114
      %s117 = sadd.s32 %s116, 1
      %p120 = scmp.eq.s32.totalorder %s19, 1
      %p121 = scmp.ne.s32.totalorder %s116, %s118
      %p122 = scmp.eq.s32.totalorder %s19, 0
      %p123 = por %p121, %p122
      %p124 = scmp.ne.s32.totalorder %s116, %s118
      %p125 = scmp.eq.s32.totalorder %s24, 1
      %p126 = por %p124, %p125
      %p127 = scmp.ne.s32.totalorder %s118, %s119
      %p128 = scmp.eq.s32.totalorder %s24, 0
      %p129 = por %p127, %p128
      %p130 = scmp.ne.s32.totalorder %s118, %s119
      %p131 = scmp.eq.s32.totalorder %s25, 1
      %p132 = por %p130, %p131
      %p134 = scmp.ne.s32.totalorder %s119, %s133
      %p135 = scmp.eq.s32.totalorder %s25, 0
      %p136 = por %p134, %p135
      %s138 = sadd.s32 %s137, 1
      %p141 = scmp.eq.s32.totalorder %s19, 1
      %p142 = scmp.ne.s32.totalorder %s137, %s139
      %p143 = scmp.eq.s32.totalorder %s19, 0
      %p144 = por %p142, %p143
      %p145 = scmp.ne.s32.totalorder %s137, %s139
      %p146 = scmp.eq.s32.totalorder %s24, 1
      %p147 = por %p145, %p146
      %p148 = scmp.ne.s32.totalorder %s139, %s140
      %p149 = scmp.eq.s32.totalorder %s24, 0
      %p150 = por %p148, %p149
      %p151 = scmp.ne.s32.totalorder %s139, %s140
      %p152 = scmp.eq.s32.totalorder %s25, 1
      %p153 = por %p151, %p152
      %p155 = scmp.ne.s32.totalorder %s140, %s154
      %p156 = scmp.eq.s32.totalorder %s25, 0
      %p157 = por %p155, %p156
      %s159 = sadd.s32 %s158, 1
      %p162 = scmp.eq.s32.totalorder %s19, 1
      %p163 = scmp.ne.s32.totalorder %s158, %s160
      %p164 = scmp.eq.s32.totalorder %s19, 0
      %p165 = por %p163, %p164
      %p166 = scmp.ne.s32.totalorder %s158, %s160
      %p167 = scmp.eq.s32.totalorder %s24, 1
      %p168 = por %p166, %p167
      %p169 = scmp.ne.s32.totalorder %s160, %s161
      %p170 = scmp.eq.s32.totalorder %s24, 0
      %p171 = por %p169, %p170
      %p172 = scmp.ne.s32.totalorder %s160, %s161
      %p173 = scmp.eq.s32.totalorder %s25, 1
      %p174 = por %p172, %p173
      %p176 = scmp.ne.s32.totalorder %s161, %s175
      %p177 = scmp.eq.s32.totalorder %s25, 0
      %p178 = por %p176, %p177
      %s180 = sadd.s32 %s179, 1
      %p183 = scmp.eq.s32.totalorder %s19, 1
      %p184 = scmp.ne.s32.totalorder %s179, %s181
      %p185 = scmp.eq.s32.totalorder %s19, 0
      %p186 = por %p184, %p185
      %p187 = scmp.ne.s32.totalorder %s179, %s181
      %p188 = scmp.eq.s32.totalorder %s24, 1
      %p189 = por %p187, %p188
      %p190 = scmp.ne.s32.totalorder %s181, %s182
      %p191 = scmp.eq.s32.totalorder %s24, 0
      %p192 = por %p190, %p191
      %p193 = scmp.ne.s32.totalorder %s181, %s182
      %p194 = scmp.eq.s32.totalorder %s25, 1
      %p195 = por %p193, %p194
      %p197 = scmp.ne.s32.totalorder %s182, %s196
      %p198 = scmp.eq.s32.totalorder %s25, 0
      %p199 = por %p197, %p198
      %s201 = sadd.s32 %s200, 1
      %p204 = scmp.eq.s32.totalorder %s19, 1
      %p205 = scmp.ne.s32.totalorder %s200, %s202
      %p206 = scmp.eq.s32.totalorder %s19, 0
      %p207 = por %p205, %p206
      %p208 = scmp.ne.s32.totalorder %s200, %s202
      %p209 = scmp.eq.s32.totalorder %s24, 1
      %p210 = por %p208, %p209
      %p211 = scmp.ne.s32.totalorder %s202, %s203
      %p212 = scmp.eq.s32.totalorder %s24, 0
      %p213 = por %p211, %p212
      %p214 = scmp.ne.s32.totalorder %s202, %s203
      %p215 = scmp.eq.s32.totalorder %s25, 1
      %p216 = por %p214, %p215
      %p218 = scmp.ne.s32.totalorder %s203, %s217
      %p219 = scmp.eq.s32.totalorder %s25, 0
      %p220 = por %p218, %p219
      %s222 = sadd.s32 %s221, 1
      %p225 = scmp.eq.s32.totalorder %s19, 1
      %p226 = scmp.ne.s32.totalorder %s221, %s223
      %p227 = scmp.eq.s32.totalorder %s19, 0
      %p228 = por %p226, %p227
      %p229 = scmp.ne.s32.totalorder %s221, %s223
      %p230 = scmp.eq.s32.totalorder %s24, 1
      %p231 = por %p229, %p230
      %p232 = scmp.ne.s32.totalorder %s223, %s224
      %p233 = scmp.eq.s32.totalorder %s24, 0
      %p234 = por %p232, %p233
      %p235 = scmp.ne.s32.totalorder %s223, %s224
      %p236 = scmp.eq.s32.totalorder %s25, 1
      %p237 = por %p235, %p236
      %p239 = scmp.ne.s32.totalorder %s224, %s238
      %p240 = scmp.eq.s32.totalorder %s25, 0
      %p241 = por %p239, %p240
      %s243 = sadd.s32 %s242, 1
      %p246 = scmp.eq.s32.totalorder %s19, 1
      %p247 = scmp.ne.s32.totalorder %s242, %s244
      %p248 = scmp.eq.s32.totalorder %s19, 0
      %p249 = por %p247, %p248
      %p250 = scmp.ne.s32.totalorder %s242, %s244
      %p251 = scmp.eq.s32.totalorder %s24, 1
      %p252 = por %p250, %p251
      %p253 = scmp.ne.s32.totalorder %s244, %s245
      %p254 = scmp.eq.s32.totalorder %s24, 0
      %p255 = por %p253, %p254
      %p256 = scmp.ne.s32.totalorder %s244, %s245
      %p257 = scmp.eq.s32.totalorder %s25, 1
      %p258 = por %p256, %p257
      %p260 = scmp.ne.s32.totalorder %s245, %s259
      %p261 = scmp.eq.s32.totalorder %s25, 0
      %p262 = por %p260, %p261
      %s264 = sadd.s32 %s263, 1
      %p267 = scmp.eq.s32.totalorder %s19, 1
      %p268 = scmp.ne.s32.totalorder %s263, %s265
      %p269 = scmp.eq.s32.totalorder %s19, 0
      %p270 = por %p268, %p269
      %p271 = scmp.ne.s32.totalorder %s263, %s265
      %p272 = scmp.eq.s32.totalorder %s24, 1
      %p273 = por %p271, %p272
      %p274 = scmp.ne.s32.totalorder %s265, %s266
      %p275 = scmp.eq.s32.totalorder %s24, 0
      %p276 = por %p274, %p275
      %p277 = scmp.ne.s32.totalorder %s265, %s266
      %p278 = scmp.eq.s32.totalorder %s25, 1
      %p279 = por %p277, %p278
      %p281 = scmp.ne.s32.totalorder %s266, %s280
      %p282 = scmp.eq.s32.totalorder %s25, 0
      %p283 = por %p281, %p282
      %s285 = sadd.s32 %s284, 1
      %p288 = scmp.eq.s32.totalorder %s19, 1
      %p289 = scmp.ne.s32.totalorder %s284, %s286
      %p290 = scmp.eq.s32.totalorder %s19, 0
      %p291 = por %p289, %p290
      %p292 = scmp.ne.s32.totalorder %s284, %s286
      %p293 = scmp.eq.s32.totalorder %s24, 1
      %p294 = por %p292, %p293
      %p295 = scmp.ne.s32.totalorder %s286, %s287
      %p296 = scmp.eq.s32.totalorder %s24, 0
      %p297 = por %p295, %p296
      %p298 = scmp.ne.s32.totalorder %s286, %s287
      %p299 = scmp.eq.s32.totalorder %s25, 1
      %p300 = por %p298, %p299
      %p302 = scmp.ne.s32.totalorder %s287, %s301
      %p303 = scmp.eq.s32.totalorder %s25, 0
      %p304 = por %p302, %p303
      %s305 = ssub.s32 %s19, %s26
      %p306 = scmp.eq.s32.totalorder %s305, 0
      %s308 = sadd.s32 %s307, 1
      %s309 = scalar_select %p306, %s307, %s308
      %p312 = pneg %p306
      %p313 = scmp.eq.s32.totalorder %s19, 1
      %p314 = por %p312, %p313
      %p315 = scmp.ne.s32.totalorder %s307, %s310
      %p316 = scmp.eq.s32.totalorder %s19, 0
      %p317 = por %p315, %p316
      %p318 = scmp.ne.s32.totalorder %s307, %s310
      %p319 = scmp.eq.s32.totalorder %s24, 1
      %p320 = por %p318, %p319
      %p321 = scmp.ne.s32.totalorder %s310, %s311
      %p322 = scmp.eq.s32.totalorder %s24, 0
      %p323 = por %p321, %p322
      %p324 = scmp.ne.s32.totalorder %s310, %s311
      %p325 = scmp.eq.s32.totalorder %s25, 1
      %p326 = por %p324, %p325
      %p328 = scmp.ne.s32.totalorder %s311, %s327
      %p329 = scmp.eq.s32.totalorder %s25, 0
      %p330 = por %p328, %p329
      %p331 = scmp.le.s32.totalorder 1, %s19
      %p332 = scmp.lt.s32.totalorder %s19, 3
      %p333 = pnand %p331, %p332
      %p334 = pneg %p333
      // Predicated region
      $region9: #{tpu_custom_call.1} parent=5 // pred_check
        _
      $region10: #{tpu_custom_call.1} parent=5 // pred_check_branch
        %336 = sbr.rel (%p333) target = $region12
      $region11: #{tpu_custom_call.1} parent=5 // pred_region
        %s337 = ssub.s32 %s19, 1
        // Predicated region
        $region13: #{tpu_custom_call.1} parent=11 // pred_check
          %p338 = pneg %p66
        $region14: #{tpu_custom_call.1} parent=11 // pred_check_branch
          %340 = sbr.rel (%p338) target = $region16
        $region15: #{tpu_custom_call.1} parent=11 // pred_region
          _
        $region16: #{tpu_custom_call.1} parent=11 // pred_fallthru
          _
        // Predicated region
        $region17: #{tpu_custom_call.1} parent=11 // pred_check
          %p341 = pneg %p87
        $region18: #{tpu_custom_call.1} parent=11 // pred_check_branch
          %343 = sbr.rel (%p341) target = $region20
        $region19: #{tpu_custom_call.1} parent=11 // pred_region
          _
        $region20: #{tpu_custom_call.1} parent=11 // pred_fallthru
          _
        // Predicated region
        $region21: #{tpu_custom_call.1} parent=11 // pred_check
          %p344 = pneg %p108
        $region22: #{tpu_custom_call.1} parent=11 // pred_check_branch
          %346 = sbr.rel (%p344) target = $region24
        $region23: #{tpu_custom_call.1} parent=11 // pred_region
          _
        $region24: #{tpu_custom_call.1} parent=11 // pred_fallthru
          _
        // Predicated region
        $region25: #{tpu_custom_call.1} parent=11 // pred_check
          %p347 = pneg %p129
        $region26: #{tpu_custom_call.1} parent=11 // pred_check_branch
          %349 = sbr.rel (%p347) target = $region28
        $region27: #{tpu_custom_call.1} parent=11 // pred_region
          _
        $region28: #{tpu_custom_call.1} parent=11 // pred_fallthru
          _
        // Predicated region
        $region29: #{tpu_custom_call.1} parent=11 // pred_check
          %p350 = pneg %p150
        $region30: #{tpu_custom_call.1} parent=11 // pred_check_branch
          %352 = sbr.rel (%p350) target = $region32
        $region31: #{tpu_custom_call.1} parent=11 // pred_region
          _
        $region32: #{tpu_custom_call.1} parent=11 // pred_fallthru
          _
        // Predicated region
        $region33: #{tpu_custom_call.1} parent=11 // pred_check
          %p353 = pneg %p171
        $region34: #{tpu_custom_call.1} parent=11 // pred_check_branch
          %355 = sbr.rel (%p353) target = $region36
        $region35: #{tpu_custom_call.1} parent=11 // pred_region
          _
        $region36: #{tpu_custom_call.1} parent=11 // pred_fallthru
          _
        // Predicated region
        $region37: #{tpu_custom_call.1} parent=11 // pred_check
          %p356 = pneg %p192
        $region38: #{tpu_custom_call.1} parent=11 // pred_check_branch
          %358 = sbr.rel (%p356) target = $region40
        $region39: #{tpu_custom_call.1} parent=11 // pred_region
          _
        $region40: #{tpu_custom_call.1} parent=11 // pred_fallthru
          _
        // Predicated region
        $region41: #{tpu_custom_call.1} parent=11 // pred_check
          %p359 = pneg %p213
        $region42: #{tpu_custom_call.1} parent=11 // pred_check_branch
          %361 = sbr.rel (%p359) target = $region44
        $region43: #{tpu_custom_call.1} parent=11 // pred_region
          _
        $region44: #{tpu_custom_call.1} parent=11 // pred_fallthru
          _
        // Predicated region
        $region45: #{tpu_custom_call.1} parent=11 // pred_check
          %p362 = pneg %p234
        $region46: #{tpu_custom_call.1} parent=11 // pred_check_branch
          %364 = sbr.rel (%p362) target = $region48
        $region47: #{tpu_custom_call.1} parent=11 // pred_region
          _
        $region48: #{tpu_custom_call.1} parent=11 // pred_fallthru
          _
        // Predicated region
        $region49: #{tpu_custom_call.1} parent=11 // pred_check
          %p365 = pneg %p255
        $region50: #{tpu_custom_call.1} parent=11 // pred_check_branch
          %367 = sbr.rel (%p365) target = $region52
        $region51: #{tpu_custom_call.1} parent=11 // pred_region
          _
        $region52: #{tpu_custom_call.1} parent=11 // pred_fallthru
          _
        // Predicated region
        $region53: #{tpu_custom_call.1} parent=11 // pred_check
          %p368 = pneg %p276
        $region54: #{tpu_custom_call.1} parent=11 // pred_check_branch
          %370 = sbr.rel (%p368) target = $region56
        $region55: #{tpu_custom_call.1} parent=11 // pred_region
          _
        $region56: #{tpu_custom_call.1} parent=11 // pred_fallthru
          _
        // Predicated region
        $region57: #{tpu_custom_call.1} parent=11 // pred_check
          %p371 = pneg %p297
        $region58: #{tpu_custom_call.1} parent=11 // pred_check_branch
          %373 = sbr.rel (%p371) target = $region60
        $region59: #{tpu_custom_call.1} parent=11 // pred_region
          _
        $region60: #{tpu_custom_call.1} parent=11 // pred_fallthru
          _
      $region12: #{tpu_custom_call.1} parent=5 // pred_fallthru
        _
      %p374 = scmp.lt.s32.totalorder %s19, 2
      // Predicated region
      $region61: #{tpu_custom_call.1} parent=5 // pred_check
        %p375 = pneg %p374
      $region62: #{tpu_custom_call.1} parent=5 // pred_check_branch
        %377 = sbr.rel (%p375) target = $region64
      $region63: #{tpu_custom_call.1} parent=5 // pred_region
        // Predicated region
        $region65: #{tpu_custom_call.1} parent=63 // pred_check
          %p378 = pneg %p39
        $region66: #{tpu_custom_call.1} parent=63 // pred_check_branch
          %380 = sbr.rel (%p378) target = $region68
        $region67: #{tpu_custom_call.1} parent=63 // pred_region
          %s381 = smul.u32 2, %s19
          %s382 = ssub.s32 3, %s381
          %p383 = scmp.lt.s32.totalorder %s382, 2
          %s384 = scalar_select %p383, %s382, 2
          %s385 = smul.u32 128, %s384
          %s386 = smul.u32 %s385, 2
          %p387 = scmp.lt.s32.totalorder %s381, 2
          %s388 = scalar_select %p387, %s381, 2
          %s389 = smul.addr %s388, 2
          %s390 = smul.addr %s389, 8
          %s391 = scalar_lea.vmem %s0, %s390
          %s392 = smul.u32 2, %s19
          %s393 = ssub.s32 3, %s392
          %p394 = scmp.lt.s32.totalorder %s393, 2
          %s395 = scalar_select %p394, %s393, 2
          %s396 = smul.u32 128, %s395
          %s397 = smul.u32 %s396, 2
        $region68: #{tpu_custom_call.1} parent=63 // pred_fallthru
          _
      $region64: #{tpu_custom_call.1} parent=5 // pred_fallthru
        _
      %p398 = scmp.le.s32.totalorder 1, %s19
      %p399 = scmp.lt.s32.totalorder %s19, 3
      %p400 = pnand %p398, %p399
      %p401 = pneg %p400
      // Predicated region
      $region69: #{tpu_custom_call.1} parent=5 // pred_check
        _
      $region70: #{tpu_custom_call.1} parent=5 // pred_check_branch
        %403 = sbr.rel (%p400) target = $region72
      $region71: #{tpu_custom_call.1} parent=5 // pred_region
        %s404 = ssub.s32 %s19, 1
        %s405 = smul.u32 2, %s24
        %s406 = ssub.s32 3, %s405
        %p407 = scmp.lt.s32.totalorder %s406, 2
        %s408 = scalar_select %p407, %s406, 2
        %s409 = smul.u32 128, %s408
        %s410 = smul.u32 %s409, 2
        %p411 = scmp.lt.s32.totalorder %s405, 2
        %s412 = scalar_select %p411, %s405, 2
        %s413 = smul.addr %s412, 2
        %s414 = smul.addr %s413, 8
        %s415 = scalar_lea.vmem %s0, %s414
        %p416 = pneg %p45
        %p417 = pneg %p42
        %p418 = pneg %p66
        %p419 = pneg %p63
        %p420 = pneg %p87
        %p421 = pneg %p84
        %p422 = pneg %p108
        %p423 = pneg %p105
        %p424 = pneg %p129
        %p425 = pneg %p126
        %p426 = pneg %p150
        %p427 = pneg %p147
        %p428 = pneg %p171
        %p429 = pneg %p168
        %p430 = pneg %p192
        %p431 = pneg %p189
        %p432 = pneg %p213
        %p433 = pneg %p210
        %p434 = pneg %p234
        %p435 = pneg %p231
        %p436 = pneg %p255
        %p437 = pneg %p252
        %p438 = pneg %p276
        %p439 = pneg %p273
        %p440 = pneg %p297
        %p441 = pneg %p294
        %p442 = pneg %p323
        %p443 = pneg %p320
        %s444 = sand.u32 %s310, 1
        %s445 = sand.u32 %s310, 1
        %s446 = smul.addr %s445, 16
        %s447 = scalar_lea.vmem [#allocation2], %s446
        %s448 = smul.u32 2, %s24
        %s449 = ssub.s32 3, %s448
        %p450 = scmp.lt.s32.totalorder %s449, 2
        %s451 = scalar_select %p450, %s449, 2
        %s452 = smul.u32 128, %s451
        %s453 = smul.u32 %s452, 2
        %p454 = scmp.lt.s32.totalorder %s448, 2
        %s455 = scalar_select %p454, %s448, 2
        %s456 = smul.addr %s455, 2
        %s457 = smul.addr %s456, 8
        %s458 = scalar_lea.vmem %s0, %s457
        %s459 = smul.u32 2, %s24
        %s460 = ssub.s32 3, %s459
        %p461 = scmp.lt.s32.totalorder %s460, 2
        %s462 = scalar_select %p461, %s460, 2
        %s463 = smul.u32 128, %s462
        %s464 = smul.u32 %s463, 2
        %s465 = smul.u32 2, %s24
        %s466 = ssub.s32 3, %s465
        %p467 = scmp.lt.s32.totalorder %s466, 2
        %s468 = scalar_select %p467, %s466, 2
        %s469 = smul.u32 128, %s468
        %v470 = vld [vmem:[%s458] sm:$0xff]
        %v471 = vld [vmem:[%s458 + $0x8] sm:$0xff]
        %v472 = vld [vmem:[%s458 + $0x10] sm:$0xff]
        %v473 = vld [vmem:[%s458 + $0x18] sm:$0xff]
        %v474 = vld [vmem:[%s1] sm:$0xff]
        %v475 = vld [vmem:[%s1 + $0x8] sm:$0xff]
        %v476 = vld [vmem:[%s1 + $0x10] sm:$0xff]
        %v477 = vld [vmem:[%s1 + $0x18] sm:$0xff]
        %v478 = vld [vmem:[%s1 + $0x20] sm:$0xff]
        %v479 = vld [vmem:[%s1 + $0x28] sm:$0xff]
        %v480 = vld [vmem:[%s1 + $0x30] sm:$0xff]
        %v481 = vld [vmem:[%s1 + $0x38] sm:$0xff]
        %v482 = vld [vmem:[%s1 + $0x40] sm:$0xff]
        %v483 = vld [vmem:[%s1 + $0x48] sm:$0xff]
        %v484 = vld [vmem:[%s1 + $0x50] sm:$0xff]
        %v485 = vld [vmem:[%s1 + $0x58] sm:$0xff]
        %v486 = vld [vmem:[%s1 + $0x60] sm:$0xff]
        %v487 = vld [vmem:[%s1 + $0x68] sm:$0xff]
        %v488 = vld [vmem:[%s1 + $0x70] sm:$0xff]
        %v489 = vld [vmem:[%s1 + $0x78] sm:$0xff]
        %v490 = vld [vmem:[%s1 + $0x80] sm:$0xff]
        %v491 = vld [vmem:[%s1 + $0x88] sm:$0xff]
        %v492 = vld [vmem:[%s1 + $0x90] sm:$0xff]
        %v493 = vld [vmem:[%s2] sm:$0x1]
        %v495 = vlaneseq
        %v496 = vshrl.u32 %v495, 7
        %v497 = vsub.s32 0, %v496
        %v498 = vrot.slane %v493, %v497
        %vm500 = vcmask 195584
        %v502 = vsel %vm500, %v471, 0
        %v505 = vsel %vm500, %v473, 0
        %507 = vmatprep.subr.mxu0 0.0
        %508 = vmatpush1.msra.mxu0 %v474
        %509 = vmatprep.subr.mxu0 0.0
        %510 = vmatpush1.msra.mxu0 %v475
        %511 = vmatprep.subr.mxu0 0.0
        %512 = vmatpush1.msra.mxu0 %v476
        %513 = vmatprep.subr.mxu0 0.0
        %514 = vmatpush1.msra.mxu0 %v477
        %515 = vmatprep.subr.mxu0 0.0
        %516 = vmatpush1.msra.mxu0 %v478
        %517 = vmatprep.subr.mxu0 0.0
        %518 = vmatpush1.msra.mxu0 %v479
        %519 = vmatprep.subr.mxu0 0.0
        %520 = vmatpush1.msra.mxu0 %v480
        %521 = vmatprep.subr.mxu0 0.0
        %522 = vmatpush1.msra.mxu0 %v481
        %523 = vmatprep.subr.mxu0 0.0
        %524 = vmatpush1.msra.mxu0 %v482
        %525 = vmatprep.subr.mxu0 0.0
        %526 = vmatpush1.msra.mxu0 %v483
        %527 = vmatprep.subr.mxu0 0.0
        %528 = vmatpush1.msra.mxu0 %v484
        %529 = vmatprep.subr.mxu0 0.0
        %530 = vmatpush1.msra.mxu0 %v485
        %531 = vmatprep.subr.mxu0 0.0
        %532 = vmatpush1.msra.mxu0 %v486
        %533 = vmatprep.subr.mxu0 0.0
        %534 = vmatpush1.msra.mxu0 %v487
        %535 = vmatprep.subr.mxu0 0.0
        %536 = vmatpush1.msra.mxu0 %v488
        %537 = vmatprep.subr.mxu0 0.0
        %538 = vmatpush1.msra.mxu0 %v489
        %539 = vmatprep.subr.mxu0 0.0
        %540 = vmatpush1.msra.mxu0 %v490
        %541 = vmatprep.subr.mxu0 0.0
        %542 = vmatpush1.msra.mxu0 %v491
        %543 = vmatprep.subr.mxu0 0.0
        %544 = vmatpush1.msra.mxu0 %v492
        %545 = vmatprep.subr.mxu0 0.0
        %546 = vmatpush1.msra.mxu0 0.0
        %547 = vmatprep.subr.mxu0 0.0
        %548 = vmatpush1.msra.mxu0 0.0
        %549 = vmatprep.subr.mxu0 0.0
        %550 = vmatpush1.msra.mxu0 0.0
        %551 = vmatprep.subr.mxu0 0.0
        %552 = vmatpush1.msra.mxu0 0.0
        %553 = vmatprep.subr.mxu0 0.0
        %554 = vmatpush1.msra.mxu0 0.0
        %555 = vmatprep.subr.mxu0 0.0
        %556 = vmatpush1.msra.mxu0 0.0
        %557 = vmatprep.subr.mxu0 0.0
        %558 = vmatpush1.msra.mxu0 0.0
        %559 = vmatprep.subr.mxu0 0.0
        %560 = vmatpush1.msra.mxu0 0.0
        %561 = vmatprep.subr.mxu0 0.0
        %562 = vmatpush1.msra.mxu0 0.0
        %563 = vmatprep.subr.mxu0 0.0
        %564 = vmatpush1.msra.mxu0 0.0
        %565 = vmatprep.subr.mxu0 0.0
        %566 = vmatpush1.msra.mxu0 0.0
        %567 = vmatprep.subr.mxu0 0.0
        %568 = vmatpush1.msra.mxu0 0.0
        %569 = vmatprep.subr.mxu0 0.0
        %570 = vmatpush1.msra.mxu0 0.0
        %571 = vmatprep.mubr.f32.mxu0 %v502
        %572 = vmatmul.mubr.f32.gmra.mrb[0].mxu0 %v470
        %v573 = vpop.f32.mrb[0].mxu0
        %v574 = vadd.f32 %v498, %v573
        %v575 = vpop.f32.mrb[0].mxu0
        %576 = vmatprep.mubr.f32.mxu0 %v505
        %577 = vmatmul.mubr.f32.gmra.mrb[0].mxu0 %v472
        %v578 = vpop.f32.mrb[0].mxu0
        %v579 = vadd.f32 %v498, %v578
        %v580 = vpop.f32.mrb[0].mxu0
        %581 = vdwg.mxu0
        %v582 = vmul.f32 %v574, %v574
        %v583 = vmul.f32 %v579, %v579
        %v584 = vld [vmem:[%s5] sm:$0xff]
        %v585 = vld [vmem:[%s5 + $0x8] sm:$0xff]
        %v586 = vld [vmem:[%s5 + $0x10] sm:$0xff]
        %v587 = vld [vmem:[%s5 + $0x18] sm:$0xff]
        %v588 = vld [vmem:[%s5 + $0x20] sm:$0xff]
        %v589 = vld [vmem:[%s5 + $0x28] sm:$0xff]
        %v590 = vld [vmem:[%s5 + $0x30] sm:$0xff]
        %v591 = vld [vmem:[%s5 + $0x38] sm:$0xff]
        %vm592 = vcmask 523264
        %v594 = vsel %vm592, %v582, 0
        %v597 = vsel %vm592, %v583, 0
        %599 = vmatprep.subr.mxu0 0.0
        %600 = vmatpush1.msra.mxu0 %v584
        %601 = vmatprep.subr.mxu0 0.0
        %602 = vmatpush1.msra.mxu0 %v585
        %603 = vmatprep.subr.mxu0 0.0
        %604 = vmatpush1.msra.mxu0 %v586
        %605 = vmatprep.subr.mxu0 0.0
        %606 = vmatpush1.msra.mxu0 %v587
        %607 = vmatprep.subr.mxu0 0.0
        %608 = vmatpush1.msra.mxu0 %v588
        %609 = vmatprep.subr.mxu0 0.0
        %610 = vmatpush1.msra.mxu0 %v589
        %611 = vmatprep.subr.mxu0 0.0
        %612 = vmatpush1.msra.mxu0 %v590
        %613 = vmatprep.subr.mxu0 0.0
        %614 = vmatpush1.msra.mxu0 %v591
        %615 = vmatprep.subr.mxu0 0.0
        %616 = vmatpush1.msra.mxu0 0.0
        %617 = vmatprep.subr.mxu0 0.0
        %618 = vmatpush1.msra.mxu0 0.0
        %619 = vmatprep.subr.mxu0 0.0
        %620 = vmatpush1.msra.mxu0 0.0
        %621 = vmatprep.subr.mxu0 0.0
        %622 = vmatpush1.msra.mxu0 0.0
        %623 = vmatprep.subr.mxu0 0.0
        %624 = vmatpush1.msra.mxu0 0.0
        %625 = vmatprep.subr.mxu0 0.0
        %626 = vmatpush1.msra.mxu0 0.0
        %627 = vmatprep.subr.mxu0 0.0
        %628 = vmatpush1.msra.mxu0 0.0
        %629 = vmatprep.subr.mxu0 0.0
        %630 = vmatpush1.msra.mxu0 0.0
        %631 = vmatprep.subr.mxu0 0.0
        %632 = vmatpush1.msra.mxu0 0.0
        %633 = vmatprep.subr.mxu0 0.0
        %634 = vmatpush1.msra.mxu0 0.0
        %635 = vmatprep.subr.mxu0 0.0
        %636 = vmatpush1.msra.mxu0 0.0
        %637 = vmatprep.subr.mxu0 0.0
        %638 = vmatpush1.msra.mxu0 0.0
        %639 = vmatprep.subr.mxu0 0.0
        %640 = vmatpush1.msra.mxu0 0.0
        %641 = vmatprep.subr.mxu0 0.0
        %642 = vmatpush1.msra.mxu0 0.0
        %643 = vmatprep.subr.mxu0 0.0
        %644 = vmatpush1.msra.mxu0 0.0
        %645 = vmatprep.subr.mxu0 0.0
        %646 = vmatpush1.msra.mxu0 0.0
        %647 = vmatprep.subr.mxu0 0.0
        %648 = vmatpush1.msra.mxu0 0.0
        %649 = vmatprep.subr.mxu0 0.0
        %650 = vmatpush1.msra.mxu0 0.0
        %651 = vmatprep.subr.mxu0 0.0
        %652 = vmatpush1.msra.mxu0 0.0
        %653 = vmatprep.subr.mxu0 0.0
        %654 = vmatpush1.msra.mxu0 0.0
        %655 = vmatprep.subr.mxu0 0.0
        %656 = vmatpush1.msra.mxu0 0.0
        %657 = vmatprep.subr.mxu0 0.0
        %658 = vmatpush1.msra.mxu0 0.0
        %659 = vmatprep.subr.mxu0 0.0
        %660 = vmatpush1.msra.mxu0 0.0
        %661 = vmatprep.subr.mxu0 0.0
        %662 = vmatpush1.msra.mxu0 0.0
        %663 = vmatprep.mubr.f32.mxu0 0.0
        %664 = vmatmul.mubr.f32.gmra.mrb[0].mxu0 %v594
        %v665 = vpop.f32.mrb[0].mxu0
        %v666 = vadd.f32 1e-05, %v665
        %v667 = vpop.f32.mrb[0].mxu0
        %668 = vmatprep.mubr.f32.mxu0 0.0
        %669 = vmatmul.mubr.f32.gmra.mrb[0].mxu0 %v597
        %v670 = vpop.f32.mrb[0].mxu0
        %v671 = vadd.f32 1e-05, %v670
        %v672 = vpop.f32.mrb[0].mxu0
        %673 = vdwg.mxu0
        %v674 = vrsqrt.pop %v666
        %v675 = vrsqrt.pop %v671
        %v676 = vld [vmem:[%s3] sm:$0x1]
        %678 = vset.pattern.permute.xlu0 0
        %679 = vperm.xlu0 %678, %v674
        %v680 = vpop.permute.xlu0 %679
        %683 = vset.pattern.permute.xlu0 0
        %684 = vperm.xlu0 %683, %v675
        %v685 = vpop.permute.xlu0 %684
        %v688 = vlaneseq
        %v689 = vshrl.u32 %v688, 7
        %v690 = vsub.s32 0, %v689
        %v691 = vrot.slane %v676, %v690
        %v693 = vmul.f32 %v680, %v691
        %v694 = vmul.f32 %v685, %v691
        %v695 = vmul.f32 %v574, %v693
        %v696 = vmul.f32 %v579, %v694
        %v697 = vld [vmem:[%s4] sm:$0x1]
        %v699 = vlaneseq
        %v700 = vshrl.u32 %v699, 7
        %v701 = vsub.s32 0, %v700
        %v702 = vrot.slane %v697, %v701
        %v704 = vadd.f32 %v695, %v702
        %v705 = vadd.f32 %v696, %v702
        %v706 = vmax.f32 %v704, 0.0
        %v707 = vmax.f32 %v705, 0.0
        %v708 = vld [vmem:[%s6] sm:$0xff]
        %v709 = vld [vmem:[%s6 + $0x8] sm:$0xff]
        %v710 = vld [vmem:[%s6 + $0x10] sm:$0xff]
        %v711 = vld [vmem:[%s6 + $0x18] sm:$0xff]
        %v712 = vld [vmem:[%s6 + $0x20] sm:$0xff]
        %v713 = vld [vmem:[%s6 + $0x28] sm:$0xff]
        %v714 = vld [vmem:[%s6 + $0x30] sm:$0xff]
        %v715 = vld [vmem:[%s6 + $0x38] sm:$0xff]
        %v716 = vld [vmem:[%s7] sm:$0x1]
        %v718 = vlaneseq
        %v719 = vshrl.u32 %v718, 7
        %v720 = vsub.s32 0, %v719
        %v721 = vrot.slane %v716, %v720
        %v724 = vsel %vm592, %v706, 0
        %v727 = vsel %vm592, %v707, 0
        %729 = vmatprep.subr.mxu0 0.0
        %730 = vmatpush1.msra.mxu0 %v708
        %731 = vmatprep.subr.mxu0 0.0
        %732 = vmatpush1.msra.mxu0 %v709
        %733 = vmatprep.subr.mxu0 0.0
        %734 = vmatpush1.msra.mxu0 %v710
        %735 = vmatprep.subr.mxu0 0.0
        %736 = vmatpush1.msra.mxu0 %v711
        %737 = vmatprep.subr.mxu0 0.0
        %738 = vmatpush1.msra.mxu0 %v712
        %739 = vmatprep.subr.mxu0 0.0
        %740 = vmatpush1.msra.mxu0 %v713
        %741 = vmatprep.subr.mxu0 0.0
        %742 = vmatpush1.msra.mxu0 %v714
        %743 = vmatprep.subr.mxu0 0.0
        %744 = vmatpush1.msra.mxu0 %v715
        %745 = vmatprep.subr.mxu0 0.0
        %746 = vmatpush1.msra.mxu0 0.0
        %747 = vmatprep.subr.mxu0 0.0
        %748 = vmatpush1.msra.mxu0 0.0
        %749 = vmatprep.subr.mxu0 0.0
        %750 = vmatpush1.msra.mxu0 0.0
        %751 = vmatprep.subr.mxu0 0.0
        %752 = vmatpush1.msra.mxu0 0.0
        %753 = vmatprep.subr.mxu0 0.0
        %754 = vmatpush1.msra.mxu0 0.0
        %755 = vmatprep.subr.mxu0 0.0
        %756 = vmatpush1.msra.mxu0 0.0
        %757 = vmatprep.subr.mxu0 0.0
        %758 = vmatpush1.msra.mxu0 0.0
        %759 = vmatprep.subr.mxu0 0.0
        %760 = vmatpush1.msra.mxu0 0.0
        %761 = vmatprep.subr.mxu0 0.0
        %762 = vmatpush1.msra.mxu0 0.0
        %763 = vmatprep.subr.mxu0 0.0
        %764 = vmatpush1.msra.mxu0 0.0
        %765 = vmatprep.subr.mxu0 0.0
        %766 = vmatpush1.msra.mxu0 0.0
        %767 = vmatprep.subr.mxu0 0.0
        %768 = vmatpush1.msra.mxu0 0.0
        %769 = vmatprep.subr.mxu0 0.0
        %770 = vmatpush1.msra.mxu0 0.0
        %771 = vmatprep.subr.mxu0 0.0
        %772 = vmatpush1.msra.mxu0 0.0
        %773 = vmatprep.subr.mxu0 0.0
        %774 = vmatpush1.msra.mxu0 0.0
        %775 = vmatprep.subr.mxu0 0.0
        %776 = vmatpush1.msra.mxu0 0.0
        %777 = vmatprep.subr.mxu0 0.0
        %778 = vmatpush1.msra.mxu0 0.0
        %779 = vmatprep.subr.mxu0 0.0
        %780 = vmatpush1.msra.mxu0 0.0
        %781 = vmatprep.subr.mxu0 0.0
        %782 = vmatpush1.msra.mxu0 0.0
        %783 = vmatprep.subr.mxu0 0.0
        %784 = vmatpush1.msra.mxu0 0.0
        %785 = vmatprep.subr.mxu0 0.0
        %786 = vmatpush1.msra.mxu0 0.0
        %787 = vmatprep.subr.mxu0 0.0
        %788 = vmatpush1.msra.mxu0 0.0
        %789 = vmatprep.subr.mxu0 0.0
        %790 = vmatpush1.msra.mxu0 0.0
        %791 = vmatprep.subr.mxu0 0.0
        %792 = vmatpush1.msra.mxu0 0.0
        %793 = vmatprep.mubr.f32.mxu0 0.0
        %794 = vmatmul.mubr.f32.gmra.mrb[0].mxu0 %v724
        %v795 = vpop.f32.mrb[0].mxu0
        %v796 = vadd.f32 %v721, %v795
        %v797 = vpop.f32.mrb[0].mxu0
        %798 = vmatprep.mubr.f32.mxu0 0.0
        %799 = vmatmul.mubr.f32.gmra.mrb[0].mxu0 %v727
        %v800 = vpop.f32.mrb[0].mxu0
        %v801 = vadd.f32 %v721, %v800
        %v802 = vpop.f32.mrb[0].mxu0
        %803 = vdwg.mxu0
        %v804 = vmul.f32 %v796, %v796
        %v805 = vmul.f32 %v801, %v801
        %v806 = vld [vmem:[%s10] sm:$0xff]
        %v807 = vld [vmem:[%s10 + $0x8] sm:$0xff]
        %v808 = vld [vmem:[%s10 + $0x10] sm:$0xff]
        %v809 = vld [vmem:[%s10 + $0x18] sm:$0xff]
        %vm810 = vcmask 261120
        %v812 = vsel %vm810, %v804, 0
        %v815 = vsel %vm810, %v805, 0
        %817 = vmatprep.subr.mxu0 0.0
        %818 = vmatpush1.msra.mxu0 %v806
        %819 = vmatprep.subr.mxu0 0.0
        %820 = vmatpush1.msra.mxu0 %v807
        %821 = vmatprep.subr.mxu0 0.0
        %822 = vmatpush1.msra.mxu0 %v808
        %823 = vmatprep.subr.mxu0 0.0
        %824 = vmatpush1.msra.mxu0 %v809
        %825 = vmatprep.subr.mxu0 0.0
        %826 = vmatpush1.msra.mxu0 0.0
        %827 = vmatprep.subr.mxu0 0.0
        %828 = vmatpush1.msra.mxu0 0.0
        %829 = vmatprep.subr.mxu0 0.0
        %830 = vmatpush1.msra.mxu0 0.0
        %831 = vmatprep.subr.mxu0 0.0
        %832 = vmatpush1.msra.mxu0 0.0
        %833 = vmatprep.subr.mxu0 0.0
        %834 = vmatpush1.msra.mxu0 0.0
        %835 = vmatprep.subr.mxu0 0.0
        %836 = vmatpush1.msra.mxu0 0.0
        %837 = vmatprep.subr.mxu0 0.0
        %838 = vmatpush1.msra.mxu0 0.0
        %839 = vmatprep.subr.mxu0 0.0
        %840 = vmatpush1.msra.mxu0 0.0
        %841 = vmatprep.subr.mxu0 0.0
        %842 = vmatpush1.msra.mxu0 0.0
        %843 = vmatprep.subr.mxu0 0.0
        %844 = vmatpush1.msra.mxu0 0.0
        %845 = vmatprep.subr.mxu0 0.0
        %846 = vmatpush1.msra.mxu0 0.0
        %847 = vmatprep.subr.mxu0 0.0
        %848 = vmatpush1.msra.mxu0 0.0
        %849 = vmatprep.subr.mxu0 0.0
        %850 = vmatpush1.msra.mxu0 0.0
        %851 = vmatprep.subr.mxu0 0.0
        %852 = vmatpush1.msra.mxu0 0.0
        %853 = vmatprep.subr.mxu0 0.0
        %854 = vmatpush1.msra.mxu0 0.0
        %855 = vmatprep.subr.mxu0 0.0
        %856 = vmatpush1.msra.mxu0 0.0
        %857 = vmatprep.subr.mxu0 0.0
        %858 = vmatpush1.msra.mxu0 0.0
        %859 = vmatprep.subr.mxu0 0.0
        %860 = vmatpush1.msra.mxu0 0.0
        %861 = vmatprep.subr.mxu0 0.0
        %862 = vmatpush1.msra.mxu0 0.0
        %863 = vmatprep.subr.mxu0 0.0
        %864 = vmatpush1.msra.mxu0 0.0
        %865 = vmatprep.subr.mxu0 0.0
        %866 = vmatpush1.msra.mxu0 0.0
        %867 = vmatprep.subr.mxu0 0.0
        %868 = vmatpush1.msra.mxu0 0.0
        %869 = vmatprep.subr.mxu0 0.0
        %870 = vmatpush1.msra.mxu0 0.0
        %871 = vmatprep.subr.mxu0 0.0
        %872 = vmatpush1.msra.mxu0 0.0
        %873 = vmatprep.subr.mxu0 0.0
        %874 = vmatpush1.msra.mxu0 0.0
        %875 = vmatprep.subr.mxu0 0.0
        %876 = vmatpush1.msra.mxu0 0.0
        %877 = vmatprep.subr.mxu0 0.0
        %878 = vmatpush1.msra.mxu0 0.0
        %879 = vmatprep.subr.mxu0 0.0
        %880 = vmatpush1.msra.mxu0 0.0
        %881 = vmatprep.mubr.f32.mxu0 0.0
        %882 = vmatmul.mubr.f32.gmra.mrb[0].mxu0 %v812
        %v883 = vpop.f32.mrb[0].mxu0
        %v884 = vadd.f32 1e-05, %v883
        %v885 = vpop.f32.mrb[0].mxu0
        %886 = vmatprep.mubr.f32.mxu0 0.0
        %887 = vmatmul.mubr.f32.gmra.mrb[0].mxu0 %v815
        %v888 = vpop.f32.mrb[0].mxu0
        %v889 = vadd.f32 1e-05, %v888
        %v890 = vpop.f32.mrb[0].mxu0
        %891 = vdwg.mxu0
        %v892 = vrsqrt.pop %v884
        %v893 = vrsqrt.pop %v889
        %v894 = vld [vmem:[%s8] sm:$0x1]
        %896 = vset.pattern.permute.xlu0 0
        %897 = vperm.xlu0 %896, %v892
        %v898 = vpop.permute.xlu0 %897
        %901 = vset.pattern.permute.xlu0 0
        %902 = vperm.xlu0 %901, %v893
        %v903 = vpop.permute.xlu0 %902
        %v906 = vlaneseq
        %v907 = vshrl.u32 %v906, 7
        %v908 = vsub.s32 0, %v907
        %v909 = vrot.slane %v894, %v908
        %v911 = vmul.f32 %v898, %v909
        %v912 = vmul.f32 %v903, %v909
        %v913 = vmul.f32 %v796, %v911
        %v914 = vmul.f32 %v801, %v912
        %v915 = vld [vmem:[%s9] sm:$0x1]
        %v917 = vlaneseq
        %v918 = vshrl.u32 %v917, 7
        %v919 = vsub.s32 0, %v918
        %v920 = vrot.slane %v915, %v919
        %v922 = vadd.f32 %v913, %v920
        %v923 = vadd.f32 %v914, %v920
        %v924 = vmax.f32 %v922, 0.0
        %v925 = vmax.f32 %v923, 0.0
        %v926 = vld [vmem:[%s11] sm:$0xff]
        %v927 = vld [vmem:[%s11 + $0x8] sm:$0xff]
        %v928 = vld [vmem:[%s11 + $0x10] sm:$0xff]
        %v929 = vld [vmem:[%s11 + $0x18] sm:$0xff]
        %v930 = vld [vmem:[%s12] sm:$0x1]
        %v932 = vlaneseq
        %v933 = vshrl.u32 %v932, 7
        %v934 = vsub.s32 0, %v933
        %v935 = vrot.slane %v930, %v934
        %v938 = vsel %vm810, %v924, 0
        %v941 = vsel %vm810, %v925, 0
        %943 = vmatprep.subr.mxu0 0.0
        %944 = vmatpush1.msra.mxu0 %v926
        %945 = vmatprep.subr.mxu0 0.0
        %946 = vmatpush1.msra.mxu0 %v927
        %947 = vmatprep.subr.mxu0 0.0
        %948 = vmatpush1.msra.mxu0 %v928
        %949 = vmatprep.subr.mxu0 0.0
        %950 = vmatpush1.msra.mxu0 %v929
        %951 = vmatprep.subr.mxu0 0.0
        %952 = vmatpush1.msra.mxu0 0.0
        %953 = vmatprep.subr.mxu0 0.0
        %954 = vmatpush1.msra.mxu0 0.0
        %955 = vmatprep.subr.mxu0 0.0
        %956 = vmatpush1.msra.mxu0 0.0
        %957 = vmatprep.subr.mxu0 0.0
        %958 = vmatpush1.msra.mxu0 0.0
        %959 = vmatprep.subr.mxu0 0.0
        %960 = vmatpush1.msra.mxu0 0.0
        %961 = vmatprep.subr.mxu0 0.0
        %962 = vmatpush1.msra.mxu0 0.0
        %963 = vmatprep.subr.mxu0 0.0
        %964 = vmatpush1.msra.mxu0 0.0
        %965 = vmatprep.subr.mxu0 0.0
        %966 = vmatpush1.msra.mxu0 0.0
        %967 = vmatprep.subr.mxu0 0.0
        %968 = vmatpush1.msra.mxu0 0.0
        %969 = vmatprep.subr.mxu0 0.0
        %970 = vmatpush1.msra.mxu0 0.0
        %971 = vmatprep.subr.mxu0 0.0
        %972 = vmatpush1.msra.mxu0 0.0
        %973 = vmatprep.subr.mxu0 0.0
        %974 = vmatpush1.msra.mxu0 0.0
        %975 = vmatprep.subr.mxu0 0.0
        %976 = vmatpush1.msra.mxu0 0.0
        %977 = vmatprep.subr.mxu0 0.0
        %978 = vmatpush1.msra.mxu0 0.0
        %979 = vmatprep.subr.mxu0 0.0
        %980 = vmatpush1.msra.mxu0 0.0
        %981 = vmatprep.subr.mxu0 0.0
        %982 = vmatpush1.msra.mxu0 0.0
        %983 = vmatprep.subr.mxu0 0.0
        %984 = vmatpush1.msra.mxu0 0.0
        %985 = vmatprep.subr.mxu0 0.0
        %986 = vmatpush1.msra.mxu0 0.0
        %987 = vmatprep.subr.mxu0 0.0
        %988 = vmatpush1.msra.mxu0 0.0
        %989 = vmatprep.subr.mxu0 0.0
        %990 = vmatpush1.msra.mxu0 0.0
        %991 = vmatprep.subr.mxu0 0.0
        %992 = vmatpush1.msra.mxu0 0.0
        %993 = vmatprep.subr.mxu0 0.0
        %994 = vmatpush1.msra.mxu0 0.0
        %995 = vmatprep.subr.mxu0 0.0
        %996 = vmatpush1.msra.mxu0 0.0
        %997 = vmatprep.subr.mxu0 0.0
        %998 = vmatpush1.msra.mxu0 0.0
        %999 = vmatprep.subr.mxu0 0.0
        %1000 = vmatpush1.msra.mxu0 0.0
        %1001 = vmatprep.subr.mxu0 0.0
        %1002 = vmatpush1.msra.mxu0 0.0
        %1003 = vmatprep.subr.mxu0 0.0
        %1004 = vmatpush1.msra.mxu0 0.0
        %1005 = vmatprep.subr.mxu0 0.0
        %1006 = vmatpush1.msra.mxu0 0.0
        %1007 = vmatprep.mubr.f32.mxu0 0.0
        %1008 = vmatmul.mubr.f32.gmra.mrb[0].mxu0 %v938
        %v1009 = vpop.f32.mrb[0].mxu0
        %v1010 = vadd.f32 %v935, %v1009
        %v1011 = vpop.f32.mrb[0].mxu0
        %1012 = vmatprep.mubr.f32.mxu0 0.0
        %1013 = vmatmul.mubr.f32.gmra.mrb[0].mxu0 %v941
        %v1014 = vpop.f32.mrb[0].mxu0
        %v1015 = vadd.f32 %v935, %v1014
        %v1016 = vpop.f32.mrb[0].mxu0
        %1017 = vdwg.mxu0
        %1020 = vrot.lane.b32.xlu0 %v1010, 1
        %v1021 = vpop.permute.xlu0 %1020
        %1022 = vrot.lane.b32.xlu0 %v1015, 1
        %v1023 = vpop.permute.xlu0 %1022
        %v1026 = vsub.f32 %v1010, %v1021
        %v1027 = vsub.f32 %v1015, %v1023
        %v1028 = vmul.f32 %v1026, 1.442695
        %v1029 = vpow.pop %v1028
        %v1030 = vmul.f32 %v1027, 1.442695
        %v1031 = vpow.pop %v1030
        %v1032 = vadd.f32 %v1029, 1.0
        %v1033 = vadd.f32 %v1031, 1.0
        %v1034 = vrcp.pop %v1032
        %v1035 = vrcp.pop %v1033
        %vm1036 = vcmask 15360
        %1037 = vst.msk [vmem:[%s447] sm:$0xff] %vm1036, %v1010
        %1038 = vst.msk [vmem:[%s447 + $0x8] sm:$0xff] %vm1036, %v1015
        %1041 = vrot.lane.b32.xlu0 %v1034, 1
        %v1042 = vpop.permute.xlu0 %1041
        %1043 = vrot.lane.b32.xlu0 %v1035, 1
        %v1044 = vpop.permute.xlu0 %1043
        %vm1047 = vcmask 23568
        %1048 = vst.msk [vmem:[%s447] sm:$0xff] %vm1047, %v1042
        %1049 = vst.msk [vmem:[%s447 + $0x8] sm:$0xff] %vm1047, %v1044
        %v1050 = vsub.f32 1.0, %v1034
        %v1051 = vsub.f32 1.0, %v1035
        %1054 = vrot.lane.b32.xlu0 %v1050, 2
        %v1055 = vpop.permute.xlu0 %1054
        %1056 = vrot.lane.b32.xlu0 %v1051, 2
        %v1057 = vpop.permute.xlu0 %1056
        %vm1060 = vcmask 31768
        %1061 = vst.msk [vmem:[%s447] sm:$0xff] %vm1060, %v1055
        %1062 = vst.msk [vmem:[%s447 + $0x8] sm:$0xff] %vm1060, %v1057
        %s1063 = sand.u32 %s310, 1
        %s1064 = sand.u32 %s310, 1
        %s1065 = smul.addr %s1064, 16
        %s1066 = scalar_lea.vmem [#allocation2], %s1065
        // Predicated region
        $region73: #{tpu_custom_call.1} parent=71 // pred_check
          %p1067 = pneg %p320
        $region74: #{tpu_custom_call.1} parent=71 // pred_check_branch
          %1069 = sbr.rel (%p1067) target = $region76
        $region75: #{tpu_custom_call.1} parent=71 // pred_region
          %s1070 = smul.u32 2, %s24
          %s1071 = ssub.s32 3, %s1070
          %p1072 = scmp.lt.s32.totalorder %s1071, 2
          %s1073 = scalar_select %p1072, %s1071, 2
          %s1074 = smul.u32 128, %s1073
          %p1075 = scmp.ne.s32.totalorder 0, %s1074
          %s1076 = smul.addr %s1070, 8
          %s1077 = scalar_lea.vmem %s13, %s1076
          // Predicated region
          $region77: #{tpu_custom_call.1} parent=75 // pred_check
            %p1078 = pneg %p1075
          $region78: #{tpu_custom_call.1} parent=75 // pred_check_branch
            %1080 = sbr.rel (%p1078) target = $region80
          $region79: #{tpu_custom_call.1} parent=75 // pred_region
            // Predicated region
            $region81: #{tpu_custom_call.1} parent=79 // pred_check
              _
            $region82: #{tpu_custom_call.1} parent=79 // pred_check_branch
              %1082 = sbr.rel (0) target = $region84
            $region83: #{tpu_custom_call.1} parent=79 // pred_region
              // Predicated region
              $region103: #{tpu_custom_call.1} parent=83 // pred_check
                _
              $region104: #{tpu_custom_call.1} parent=83 // pred_check_branch
                %1133 = sbr.rel (0) target = $region106
              $region105: #{tpu_custom_call.1} parent=83 // pred_region
                %s1134 = sshrl.u32 %s1073, 1
                // While loop
                $region107: #{tpu_custom_call.1} parent=105 // loop_pre_header
                  _
                $region108: #{tpu_custom_call.1} parent=105 // loop_header
                  %s1136 = sphi 0, %s1138
                  %p1137 = scmp.ge.s32.totalorder %s1136, %s1134
                  %s1141 = sphi 0, %s1150
                  %s1142 = sphi %s1066, %s1153
                  %s1143 = sphi %s1077, %s1154
                $region109: #{tpu_custom_call.1} parent=105 // loop_header_branch
                  %1140 = sbr.rel (%p1137) target = $region113
                $region110: #{tpu_custom_call.1} parent=105 // loop_body
                  %v1144 = vld [vmem:[%s1142] sm:$0xff]
                  %1145 = vst [vmem:[%s1143] sm:$0xff] %v1144
                  %v1146 = vld [vmem:[%s1142 + $0x8] sm:$0xff]
                  %1147 = vst [vmem:[%s1143 + $0x8] sm:$0xff] %v1146
                  %s1148 = sadd.s32 1, %s1141
                  %p1149 = scmp.ge.s32.totalorder %s1148, %s1134
                  %s1150 = scalar_select %p1149, 0, %s1148
                  %s1151 = smul.u32 %s1150, 16
                  %s1152 = smul.u32 %s1150, 16
                  %s1153 = scalar_lea.vmem %s1066, %s1151 [#allocation2]
                  %s1154 = scalar_lea.vmem %s1077, %s1152
                $region111: #{tpu_custom_call.1} parent=105 // loop_footer
                  %s1138 = sadd.s32 %s1136, 1
                $region112: #{tpu_custom_call.1} parent=105 // loop_footer_branch
                  %1135 = sbr.rel target = $region108
                $region113: #{tpu_custom_call.1} parent=105 // loop_exit
                  _
                %s1155 = sshrl.u32 %s1073, 1
                %s1156 = sand.u32 %s1073, 1
                %s1157 = smul.u32 %s1155, 2
                %s1158 = smul.u32 8, %s1157
                %s1159 = scalar_lea.vmem %s1066, %s1158 [#allocation2]
                %s1160 = smul.u32 8, %s1157
                %s1161 = scalar_lea.vmem %s1077, %s1160
                // While loop
                $region114: #{tpu_custom_call.1} parent=105 // loop_pre_header
                  _
                $region115: #{tpu_custom_call.1} parent=105 // loop_header
                  %s1163 = sphi 0, %s1165
                  %p1164 = scmp.ge.s32.totalorder %s1163, %s1156
                  %s1168 = sphi 0, %s1175
                  %s1169 = sphi %s1159, %s1178
                  %s1170 = sphi %s1161, %s1179
                $region116: #{tpu_custom_call.1} parent=105 // loop_header_branch
                  %1167 = sbr.rel (%p1164) target = $region120
                $region117: #{tpu_custom_call.1} parent=105 // loop_body
                  %v1171 = vld [vmem:[%s1169] sm:$0xff]
                  %1172 = vst [vmem:[%s1170] sm:$0xff] %v1171
                  %s1173 = sadd.s32 1, %s1168
                  %p1174 = scmp.ge.s32.totalorder %s1173, %s1156
                  %s1175 = scalar_select %p1174, 0, %s1173
                  %s1176 = smul.u32 %s1175, 8
                  %s1177 = smul.u32 %s1175, 8
                  %s1178 = scalar_lea.vmem %s1159, %s1176 [#allocation2]
                  %s1179 = scalar_lea.vmem %s1161, %s1177
                $region118: #{tpu_custom_call.1} parent=105 // loop_footer
                  %s1165 = sadd.s32 %s1163, 1
                $region119: #{tpu_custom_call.1} parent=105 // loop_footer_branch
                  %1162 = sbr.rel target = $region115
                $region120: #{tpu_custom_call.1} parent=105 // loop_exit
                  _
              $region106: #{tpu_custom_call.1} parent=83 // pred_fallthru
                _
              // Predicated region
              $region121: #{tpu_custom_call.1} parent=83 // pred_check
                _
              $region122: #{tpu_custom_call.1} parent=83 // pred_check_branch
                %1181 = sbr.rel target = $region124
              $region123: #{tpu_custom_call.1} parent=83 // pred_region
                _
              $region124: #{tpu_custom_call.1} parent=83 // pred_fallthru
                _
            $region84: #{tpu_custom_call.1} parent=79 // pred_fallthru
              _
            // Predicated region
            $region85: #{tpu_custom_call.1} parent=79 // pred_check
              _
            $region86: #{tpu_custom_call.1} parent=79 // pred_check_branch
              %1084 = sbr.rel target = $region88
            $region87: #{tpu_custom_call.1} parent=79 // pred_region
              %s1086 = sshrl.u32 %s1073, 1
              // While loop
              $region89: #{tpu_custom_call.1} parent=87 // loop_pre_header
                _
              $region90: #{tpu_custom_call.1} parent=87 // loop_header
                %s1088 = sphi 0, %s1090
                %p1089 = scmp.ge.s32.totalorder %s1088, %s1086
                %s1093 = sphi 0, %s1102
                %s1094 = sphi %s1066, %s1105
                %s1095 = sphi %s1077, %s1106
              $region91: #{tpu_custom_call.1} parent=87 // loop_header_branch
                %1092 = sbr.rel (%p1089) target = $region95
              $region92: #{tpu_custom_call.1} parent=87 // loop_body
                %v1096 = vld [vmem:[%s1094] sm:$0xff]
                %1097 = vst [vmem:[%s1095] sm:$0xff] %v1096
                %v1098 = vld [vmem:[%s1094 + $0x8] sm:$0xff]
                %1099 = vst [vmem:[%s1095 + $0x8] sm:$0xff] %v1098
                %s1100 = sadd.s32 1, %s1093
                %p1101 = scmp.ge.s32.totalorder %s1100, %s1086
                %s1102 = scalar_select %p1101, 0, %s1100
                %s1103 = smul.u32 %s1102, 16
                %s1104 = smul.u32 %s1102, 16
                %s1105 = scalar_lea.vmem %s1066, %s1103 [#allocation2]
                %s1106 = scalar_lea.vmem %s1077, %s1104
              $region93: #{tpu_custom_call.1} parent=87 // loop_footer
                %s1090 = sadd.s32 %s1088, 1
              $region94: #{tpu_custom_call.1} parent=87 // loop_footer_branch
                %1087 = sbr.rel target = $region90
              $region95: #{tpu_custom_call.1} parent=87 // loop_exit
                _
              %s1107 = sshrl.u32 %s1073, 1
              %s1108 = sand.u32 %s1073, 1
              %s1109 = smul.u32 %s1107, 2
              %s1110 = smul.u32 8, %s1109
              %s1111 = scalar_lea.vmem %s1066, %s1110 [#allocation2]
              %s1112 = smul.u32 8, %s1109
              %s1113 = scalar_lea.vmem %s1077, %s1112
              // While loop
              $region96: #{tpu_custom_call.1} parent=87 // loop_pre_header
                _
              $region97: #{tpu_custom_call.1} parent=87 // loop_header
                %s1115 = sphi 0, %s1117
                %p1116 = scmp.ge.s32.totalorder %s1115, %s1108
                %s1120 = sphi 0, %s1127
                %s1121 = sphi %s1111, %s1130
                %s1122 = sphi %s1113, %s1131
              $region98: #{tpu_custom_call.1} parent=87 // loop_header_branch
                %1119 = sbr.rel (%p1116) target = $region102
              $region99: #{tpu_custom_call.1} parent=87 // loop_body
                %v1123 = vld [vmem:[%s1121] sm:$0xff]
                %1124 = vst [vmem:[%s1122] sm:$0xff] %v1123
                %s1125 = sadd.s32 1, %s1120
                %p1126 = scmp.ge.s32.totalorder %s1125, %s1108
                %s1127 = scalar_select %p1126, 0, %s1125
                %s1128 = smul.u32 %s1127, 8
                %s1129 = smul.u32 %s1127, 8
                %s1130 = scalar_lea.vmem %s1111, %s1128 [#allocation2]
                %s1131 = scalar_lea.vmem %s1113, %s1129
              $region100: #{tpu_custom_call.1} parent=87 // loop_footer
                %s1117 = sadd.s32 %s1115, 1
              $region101: #{tpu_custom_call.1} parent=87 // loop_footer_branch
                %1114 = sbr.rel target = $region97
              $region102: #{tpu_custom_call.1} parent=87 // loop_exit
                _
            $region88: #{tpu_custom_call.1} parent=79 // pred_fallthru
              _
          $region80: #{tpu_custom_call.1} parent=75 // pred_fallthru
            _
          %1182 = vnop
        $region76: #{tpu_custom_call.1} parent=71 // pred_fallthru
          _
      $region72: #{tpu_custom_call.1} parent=5 // pred_fallthru
        _
      %p1183 = scmp.le.s32.totalorder 2, %s19
      // Predicated region
      $region125: #{tpu_custom_call.1} parent=5 // pred_check
        %p1184 = pneg %p1183
      $region126: #{tpu_custom_call.1} parent=5 // pred_check_branch
        %1186 = sbr.rel (%p1184) target = $region128
      $region127: #{tpu_custom_call.1} parent=5 // pred_region
        %s1187 = ssub.s32 %s19, 2
        // Predicated region
        $region129: #{tpu_custom_call.1} parent=127 // pred_check
          %p1188 = pneg %p326
        $region130: #{tpu_custom_call.1} parent=127 // pred_check_branch
          %1190 = sbr.rel (%p1188) target = $region132
        $region131: #{tpu_custom_call.1} parent=127 // pred_region
          %s1191 = sand.u32 %s311, 1
          %s1192 = sand.u32 %s311, 1
          %s1193 = smul.addr %s1192, 16
          %s1194 = scalar_lea.vmem [#allocation2], %s1193
        $region132: #{tpu_custom_call.1} parent=127 // pred_fallthru
          _
      $region128: #{tpu_custom_call.1} parent=5 // pred_fallthru
        _
    $region6: #{tpu_custom_call.1} parent=1 // loop_footer
      %s23 = sadd.s32 1, %s19
    $region7: #{tpu_custom_call.1} parent=1 // loop_footer_branch
      %18 = sbr.rel target = $region3
    $region8: #{tpu_custom_call.1} parent=1 // loop_exit
      _

</llo_original>
